<compile_context>
chip_gen: v7x
topology: tpu7x:2x2x1
jax: 0.10.0
libtpu: 0.0.40
codegen_flags: <defaults>
</compile_context>

<pallas_src>
import functools

import jax
import jax.numpy as jnp
from jax import lax
from jax.experimental import pallas as pl
from jax.experimental.pallas import tpu as pltpu

EPS = 1e-5      # BatchNorm2d default eps
LANE = 128      # pad Cout up to the 128-lane vreg width
TILE_M = 128    # rows per in-kernel tile (16 f32 vregs live per tile)


# ----------------------------- Pallas kernel --------------------------------

def _conv_bn_relu_kernel(x_ref, w_ref, gamma_ref, beta_ref, out_ref, conv_ref,
                         *, m_pad, tile_m, n_valid):
    """Fused conv (one K=Cin*KH*KW matmul) + BatchNorm2d (batch stats) + ReLU.

    x_ref:     [M_pad, Kp]   bf16  im2col patches (valid rows; zero tail rows)
    w_ref:     [Kp, 128]     bf16  conv weights, Cout zero-padded to 128 lanes
    gamma_ref: [1, 128]      f32
    beta_ref:  [1, 128]      f32
    out_ref:   [M_pad, 128]  bf16  lane-dense store
    conv_ref:  [M_pad, 128]  f32   VMEM scratch holding the full-precision conv output
    """
    n_tiles = m_pad // tile_m
    w = w_ref[...]                                   # small (Kp x 128), stays resident

    # Sweep 1: conv tiles -> f32 scratch, plus per-channel sum / sum-of-squares.
    # Zero-padded tail rows contribute exactly 0 to both sums (zero lhs rows), so no mask.
    def conv_body(t, carry):
        s, ss = carry
        off = pl.multiple_of(t * tile_m, tile_m)
        c = jnp.dot(x_ref[pl.ds(off, tile_m), :], w,
                    preferred_element_type=jnp.float32)           # [tile_m, 128] f32
        conv_ref[pl.ds(off, tile_m), :] = c
        s = s + jnp.sum(c, axis=0, keepdims=True)                  # XLU reductions
        ss = ss + jnp.sum(c * c, axis=0, keepdims=True)
        return s, ss

    zero = jnp.zeros((1, LANE), jnp.float32)
    s, ss = lax.fori_loop(0, n_tiles, conv_body, (zero, zero), unroll=True)

    # BatchNorm2d, training mode: biased stats over the valid (N, H, W) rows, per channel.
    inv_n = 1.0 / float(n_valid)
    mean = s * inv_n
    var = jnp.maximum(ss * inv_n - mean * mean, 0.0)   # clamp guards f32 cancellation
    scale = gamma_ref[...] * lax.rsqrt(var + EPS)
    shift = beta_ref[...] - mean * scale

    # Sweep 2: apply folded scale/shift + ReLU, store bf16 full-width (unmasked vst).
    def bn_body(t, carry):
        off = pl.multiple_of(t * tile_m, tile_m)
        c = conv_ref[pl.ds(off, tile_m), :]
        y = jnp.maximum(c * scale + shift, 0.0)
        out_ref[pl.ds(off, tile_m), :] = y.astype(out_ref.dtype)
        return carry

    lax.fori_loop(0, n_tiles, bn_body, 0, unroll=True)


# ------------------------------ JAX wrapper ----------------------------------

def cnn_block_forward(x_nchw, params, *, padding=1):
    """Forward of CNNBlock: ReLU(BN(Conv2d(x))).  x: [N, Cin, H, W] -> [N, Cout, H, W]."""
    w, gamma, beta = params["w"], params["gamma"], params["beta"]
    n, cin, h, wdt = x_nchw.shape
    kh, kw, _, cout = w.shape
    assert cout <= LANE
    ho = h + 2 * padding - kh + 1                                  # stride 1
    wo = wdt + 2 * padding - kw + 1

    # --- XLA glue: layout + tiny im2col (valid rows only, ~36 KiB bf16 here) ---
    x = jnp.transpose(x_nchw, (0, 2, 3, 1))                        # NCHW -> NHWC
    xp = jnp.pad(x, ((0, 0), (padding, padding), (padding, padding), (0, 0)))
    # Shifted windows ordered (kh, kw, cin) to match w.reshape(KH*KW*Cin, Cout).
    patches = [xp[:, i:i + ho, j:j + wo, :] for i in range(kh) for j in range(kw)]
    lhs = jnp.concatenate(patches, axis=-1).reshape(n * ho * wo, kh * kw * cin)

    m = n * ho * wo
    k = kh * kw * cin
    m_pad = ((m + TILE_M - 1) // TILE_M) * TILE_M                  # zero tail rows (masked-free)
    kp = ((k + 15) // 16) * 16                                     # bf16 sublane-packing on K

    lhs = jnp.pad(lhs, ((0, m_pad - m), (0, kp - k))).astype(jnp.bfloat16)
    wq = jnp.pad(w.reshape(k, cout), ((0, kp - k), (0, LANE - cout))).astype(jnp.bfloat16)
    g = jnp.pad(gamma, (0, LANE - cout)).reshape(1, LANE).astype(jnp.float32)
    b = jnp.pad(beta, (0, LANE - cout)).reshape(1, LANE).astype(jnp.float32)

    kernel = functools.partial(_conv_bn_relu_kernel,
                               m_pad=m_pad, tile_m=TILE_M, n_valid=m)
    vmem = pl.BlockSpec(memory_space=pltpu.MemorySpace.VMEM)

    out = pl.pallas_call(
        kernel,
        out_shape=jax.ShapeDtypeStruct((m_pad, LANE), jnp.bfloat16),
        in_specs=[vmem, vmem, vmem, vmem],
        out_specs=vmem,
        scratch_shapes=[pltpu.VMEM((m_pad, LANE), jnp.float32)],
    )(lhs, wq, g, b)

    # Crop padded rows / lanes back to the real output, return NCHW f32 (PyTorch layout/dtype).
    y = out[:m, :cout].reshape(n, ho, wo, cout)
    return jnp.transpose(y, (0, 3, 1, 2)).astype(jnp.float32)


# ----------------------- deterministic parameter init -----------------------

def init_params(key, in_channels, out_channels, ksize=3):
    fan_in = in_channels * ksize * ksize
    std = (2.0 / fan_in) ** 0.5                                    # kaiming_normal_ (relu)
    w = std * jax.random.normal(key, (ksize, ksize, in_channels, out_channels), jnp.float32)
    gamma = jnp.ones((out_channels,), jnp.float32)                 # BatchNorm2d defaults
    beta = jnp.zeros((out_channels,), jnp.float32)
    return {"w": w, "gamma": gamma, "beta": beta}                  # conv has no bias (BN on)


# --------------------------- pure-JAX reference ------------------------------

def reference_forward(x_nchw, params, *, padding=1):
    w, gamma, beta = params["w"], params["gamma"], params["beta"]
    # Match the kernel's bf16 MXU inputs (f32 accumulation) for a tight comparison.
    x = jnp.transpose(x_nchw, (0, 2, 3, 1)).astype(jnp.bfloat16).astype(jnp.float32)
    wr = w.astype(jnp.bfloat16).astype(jnp.float32)
    y = lax.conv_general_dilated(
        x, wr, window_strides=(1, 1),
        padding=((padding, padding), (padding, padding)),
        dimension_numbers=("NHWC", "HWIO", "NHWC"),
        precision=lax.Precision.HIGHEST)
    mean = jnp.mean(y, axis=(0, 1, 2), keepdims=True)
    var = jnp.mean((y - mean) ** 2, axis=(0, 1, 2), keepdims=True)
    y = (y - mean) * lax.rsqrt(var + EPS) * gamma + beta
    y = jnp.maximum(y, 0.0)
    return jnp.transpose(y, (0, 3, 1, 2))


# ---------------------------------- main -------------------------------------

if __name__ == "__main__":
    # CNNBlock(in_channels=4, out_channels=16, kernel_size=3, stride=1, padding=1,
    #          activation_fn=nn.ReLU, batch_norm=True, dropout_rate=0.0)
    in_channels, out_channels = 4, 16

    key = jax.random.PRNGKey(0)
    kx, kw = jax.random.split(key)
    x = jax.random.normal(kx, (2, in_channels, 16, 16), jnp.float32)   # NCHW like PyTorch
    params = init_params(kw, in_channels, out_channels)

    y = jax.jit(cnn_block_forward)(x, params)
    y = jax.block_until_ready(y)
    assert y.shape == (2, out_channels, 16, 16)

    ref = reference_forward(x, params)
    assert jnp.allclose(y, ref, rtol=5e-3, atol=5e-3), float(jnp.max(jnp.abs(y - ref)))

    print("KERNEL_OK")
</pallas_src>

<mosaic_0001>
module attributes {stable_mosaic.version = 11 : i64} {
  func.func @_conv_bn_relu_kernel(%arg0: memref<512x48xbf16, #tpu.memory_space<vmem>>, %arg1: memref<48x128xbf16, #tpu.memory_space<vmem>>, %arg2: memref<1x128xf32, #tpu.memory_space<vmem>>, %arg3: memref<1x128xf32, #tpu.memory_space<vmem>>, %arg4: memref<512x128xbf16, #tpu.memory_space<vmem>>, %arg5: memref<512x128xf32, #tpu.memory_space<vmem>>) attributes {dimension_semantics = [], scalar_prefetch = 0 : i64, scratch_operands = 1 : i64, tpu.core_type = #tpu.core_type<tc>} {
    %c0 = arith.constant 0 : index
    %c0_0 = arith.constant 0 : index
    %0 = vector.load %arg1[%c0, %c0_0] : memref<48x128xbf16, #tpu.memory_space<vmem>>, vector<48x128xbf16>
    %cst = arith.constant 0.000000e+00 : f32
    %1 = vector.broadcast %cst : f32 to vector<1x128xf32>
    %c0_i32 = arith.constant 0 : i32
    %c128_i32 = arith.constant 128 : i32
    %2 = arith.muli %c0_i32, %c128_i32 : i32
    %3 = tpu.assume_multiple %2, 128 : i32
    %4 = arith.index_cast %3 : i32 to index
    %c0_1 = arith.constant 0 : index
    %5 = vector.load %arg0[%4, %c0_1] : memref<512x48xbf16, #tpu.memory_space<vmem>>, vector<128x48xbf16>
    %cst_2 = arith.constant dense<0.000000e+00> : vector<128x128xf32>
    %6 = tpu.matmul %5, %0, %cst_2 {dimension_numbers = #tpu.dot_dimension_numbers<[1], [0], [0], [1], [0, 0, 1, 1], [], []>} : vector<128x48xbf16>, vector<48x128xbf16>, vector<128x128xf32> -> vector<128x128xf32>
    %7 = arith.index_cast %3 : i32 to index
    %c0_3 = arith.constant 0 : index
    %8 = vector.load %arg5[%7, %c0_3] : memref<512x128xf32, #tpu.memory_space<vmem>>, vector<128x128xf32>
    tpu.vector_store %arg5[%7, %c0_3], %6 {strides = array<i32>} : memref<512x128xf32, #tpu.memory_space<vmem>>, vector<128x128xf32>,
    %cst_4 = arith.constant dense<0.000000e+00> : vector<128xf32>
    %9 = vector.multi_reduction <add>, %6, %cst_4 [0] : vector<128x128xf32> to vector<128xf32>
    %10 = vector.shape_cast %9 : vector<128xf32> to vector<1x128xf32>
    %11 = arith.addf %1, %10 : vector<1x128xf32>
    %12 = arith.mulf %6, %6 : vector<128x128xf32>
    %cst_5 = arith.constant dense<0.000000e+00> : vector<128xf32>
    %13 = vector.multi_reduction <add>, %12, %cst_5 [0] : vector<128x128xf32> to vector<128xf32>
    %14 = vector.shape_cast %13 : vector<128xf32> to vector<1x128xf32>
    %15 = arith.addf %1, %14 : vector<1x128xf32>
    %c1_i32 = arith.constant 1 : i32
    %c128_i32_6 = arith.constant 128 : i32
    %16 = arith.muli %c1_i32, %c128_i32_6 : i32
    %17 = tpu.assume_multiple %16, 128 : i32
    %18 = arith.index_cast %17 : i32 to index
    %c0_7 = arith.constant 0 : index
    %19 = vector.load %arg0[%18, %c0_7] : memref<512x48xbf16, #tpu.memory_space<vmem>>, vector<128x48xbf16>
    %cst_8 = arith.constant dense<0.000000e+00> : vector<128x128xf32>
    %20 = tpu.matmul %19, %0, %cst_8 {dimension_numbers = #tpu.dot_dimension_numbers<[1], [0], [0], [1], [0, 0, 1, 1], [], []>} : vector<128x48xbf16>, vector<48x128xbf16>, vector<128x128xf32> -> vector<128x128xf32>
    %21 = arith.index_cast %17 : i32 to index
    %c0_9 = arith.constant 0 : index
    %22 = vector.load %arg5[%21, %c0_9] : memref<512x128xf32, #tpu.memory_space<vmem>>, vector<128x128xf32>
    tpu.vector_store %arg5[%21, %c0_9], %20 {strides = array<i32>} : memref<512x128xf32, #tpu.memory_space<vmem>>, vector<128x128xf32>,
    %cst_10 = arith.constant dense<0.000000e+00> : vector<128xf32>
    %23 = vector.multi_reduction <add>, %20, %cst_10 [0] : vector<128x128xf32> to vector<128xf32>
    %24 = vector.shape_cast %23 : vector<128xf32> to vector<1x128xf32>
    %25 = arith.addf %11, %24 : vector<1x128xf32>
    %26 = arith.mulf %20, %20 : vector<128x128xf32>
    %cst_11 = arith.constant dense<0.000000e+00> : vector<128xf32>
    %27 = vector.multi_reduction <add>, %26, %cst_11 [0] : vector<128x128xf32> to vector<128xf32>
    %28 = vector.shape_cast %27 : vector<128xf32> to vector<1x128xf32>
    %29 = arith.addf %15, %28 : vector<1x128xf32>
    %c2_i32 = arith.constant 2 : i32
    %c128_i32_12 = arith.constant 128 : i32
    %30 = arith.muli %c2_i32, %c128_i32_12 : i32
    %31 = tpu.assume_multiple %30, 128 : i32
    %32 = arith.index_cast %31 : i32 to index
    %c0_13 = arith.constant 0 : index
    %33 = vector.load %arg0[%32, %c0_13] : memref<512x48xbf16, #tpu.memory_space<vmem>>, vector<128x48xbf16>
    %cst_14 = arith.constant dense<0.000000e+00> : vector<128x128xf32>
    %34 = tpu.matmul %33, %0, %cst_14 {dimension_numbers = #tpu.dot_dimension_numbers<[1], [0], [0], [1], [0, 0, 1, 1], [], []>} : vector<128x48xbf16>, vector<48x128xbf16>, vector<128x128xf32> -> vector<128x128xf32>
    %35 = arith.index_cast %31 : i32 to index
    %c0_15 = arith.constant 0 : index
    %36 = vector.load %arg5[%35, %c0_15] : memref<512x128xf32, #tpu.memory_space<vmem>>, vector<128x128xf32>
    tpu.vector_store %arg5[%35, %c0_15], %34 {strides = array<i32>} : memref<512x128xf32, #tpu.memory_space<vmem>>, vector<128x128xf32>,
    %cst_16 = arith.constant dense<0.000000e+00> : vector<128xf32>
    %37 = vector.multi_reduction <add>, %34, %cst_16 [0] : vector<128x128xf32> to vector<128xf32>
    %38 = vector.shape_cast %37 : vector<128xf32> to vector<1x128xf32>
    %39 = arith.addf %25, %38 : vector<1x128xf32>
    %40 = arith.mulf %34, %34 : vector<128x128xf32>
    %cst_17 = arith.constant dense<0.000000e+00> : vector<128xf32>
    %41 = vector.multi_reduction <add>, %40, %cst_17 [0] : vector<128x128xf32> to vector<128xf32>
    %42 = vector.shape_cast %41 : vector<128xf32> to vector<1x128xf32>
    %43 = arith.addf %29, %42 : vector<1x128xf32>
    %c3_i32 = arith.constant 3 : i32
    %c128_i32_18 = arith.constant 128 : i32
    %44 = arith.muli %c3_i32, %c128_i32_18 : i32
    %45 = tpu.assume_multiple %44, 128 : i32
    %46 = arith.index_cast %45 : i32 to index
    %c0_19 = arith.constant 0 : index
    %47 = vector.load %arg0[%46, %c0_19] : memref<512x48xbf16, #tpu.memory_space<vmem>>, vector<128x48xbf16>
    %cst_20 = arith.constant dense<0.000000e+00> : vector<128x128xf32>
    %48 = tpu.matmul %47, %0, %cst_20 {dimension_numbers = #tpu.dot_dimension_numbers<[1], [0], [0], [1], [0, 0, 1, 1], [], []>} : vector<128x48xbf16>, vector<48x128xbf16>, vector<128x128xf32> -> vector<128x128xf32>
    %49 = arith.index_cast %45 : i32 to index
    %c0_21 = arith.constant 0 : index
    %50 = vector.load %arg5[%49, %c0_21] : memref<512x128xf32, #tpu.memory_space<vmem>>, vector<128x128xf32>
    tpu.vector_store %arg5[%49, %c0_21], %48 {strides = array<i32>} : memref<512x128xf32, #tpu.memory_space<vmem>>, vector<128x128xf32>,
    %cst_22 = arith.constant dense<0.000000e+00> : vector<128xf32>
    %51 = vector.multi_reduction <add>, %48, %cst_22 [0] : vector<128x128xf32> to vector<128xf32>
    %52 = vector.shape_cast %51 : vector<128xf32> to vector<1x128xf32>
    %53 = arith.addf %39, %52 : vector<1x128xf32>
    %54 = arith.mulf %48, %48 : vector<128x128xf32>
    %cst_23 = arith.constant dense<0.000000e+00> : vector<128xf32>
    %55 = vector.multi_reduction <add>, %54, %cst_23 [0] : vector<128x128xf32> to vector<128xf32>
    %56 = vector.shape_cast %55 : vector<128xf32> to vector<1x128xf32>
    %57 = arith.addf %43, %56 : vector<1x128xf32>
    %c4_i32 = arith.constant 4 : i32
    %cst_24 = arith.constant 0.001953125 : f32
    %58 = vector.broadcast %cst_24 : f32 to vector<1x128xf32>
    %59 = arith.mulf %53, %58 : vector<1x128xf32>
    %cst_25 = arith.constant 0.001953125 : f32
    %60 = vector.broadcast %cst_25 : f32 to vector<1x128xf32>
    %61 = arith.mulf %57, %60 : vector<1x128xf32>
    %62 = arith.mulf %59, %59 : vector<1x128xf32>
    %63 = arith.subf %61, %62 : vector<1x128xf32>
    %cst_26 = arith.constant 0.000000e+00 : f32
    %64 = vector.broadcast %cst_26 : f32 to vector<1x128xf32>
    %65 = arith.maximumf %63, %64 : vector<1x128xf32>
    %c0_27 = arith.constant 0 : index
    %c0_28 = arith.constant 0 : index
    %66 = vector.load %arg2[%c0_27, %c0_28] : memref<1x128xf32, #tpu.memory_space<vmem>>, vector<1x128xf32>
    %cst_29 = arith.constant 9.99999974E-6 : f32
    %67 = vector.broadcast %cst_29 : f32 to vector<1x128xf32>
    %68 = arith.addf %65, %67 : vector<1x128xf32>
    %69 = math.rsqrt %68 : vector<1x128xf32>
    %70 = arith.mulf %66, %69 : vector<1x128xf32>
    %c0_30 = arith.constant 0 : index
    %c0_31 = arith.constant 0 : index
    %71 = vector.load %arg3[%c0_30, %c0_31] : memref<1x128xf32, #tpu.memory_space<vmem>>, vector<1x128xf32>
    %72 = arith.mulf %59, %70 : vector<1x128xf32>
    %73 = arith.subf %71, %72 : vector<1x128xf32>
    %c0_i32_32 = arith.constant 0 : i32
    %c128_i32_33 = arith.constant 128 : i32
    %74 = arith.muli %c0_i32_32, %c128_i32_33 : i32
    %75 = tpu.assume_multiple %74, 128 : i32
    %76 = arith.index_cast %75 : i32 to index
    %c0_34 = arith.constant 0 : index
    %77 = vector.load %arg5[%76, %c0_34] : memref<512x128xf32, #tpu.memory_space<vmem>>, vector<128x128xf32>
    %78 = vector.broadcast %70 : vector<1x128xf32> to vector<128x128xf32>
    %79 = arith.mulf %77, %78 : vector<128x128xf32>
    %80 = vector.broadcast %73 : vector<1x128xf32> to vector<128x128xf32>
    %81 = arith.addf %79, %80 : vector<128x128xf32>
    %cst_35 = arith.constant 0.000000e+00 : f32
    %82 = vector.broadcast %cst_35 : f32 to vector<128x128xf32>
    %83 = arith.maximumf %81, %82 : vector<128x128xf32>
    %84 = arith.truncf %83 : vector<128x128xf32> to vector<128x128xbf16>
    %85 = arith.index_cast %75 : i32 to index
    %c0_36 = arith.constant 0 : index
    %86 = vector.load %arg4[%85, %c0_36] : memref<512x128xbf16, #tpu.memory_space<vmem>>, vector<128x128xbf16>
    tpu.vector_store %arg4[%85, %c0_36], %84 {strides = array<i32>} : memref<512x128xbf16, #tpu.memory_space<vmem>>, vector<128x128xbf16>,
    %c1_i32_37 = arith.constant 1 : i32
    %c128_i32_38 = arith.constant 128 : i32
    %87 = arith.muli %c1_i32_37, %c128_i32_38 : i32
    %88 = tpu.assume_multiple %87, 128 : i32
    %89 = arith.index_cast %88 : i32 to index
    %c0_39 = arith.constant 0 : index
    %90 = vector.load %arg5[%89, %c0_39] : memref<512x128xf32, #tpu.memory_space<vmem>>, vector<128x128xf32>
    %91 = vector.broadcast %70 : vector<1x128xf32> to vector<128x128xf32>
    %92 = arith.mulf %90, %91 : vector<128x128xf32>
    %93 = vector.broadcast %73 : vector<1x128xf32> to vector<128x128xf32>
    %94 = arith.addf %92, %93 : vector<128x128xf32>
    %cst_40 = arith.constant 0.000000e+00 : f32
    %95 = vector.broadcast %cst_40 : f32 to vector<128x128xf32>
    %96 = arith.maximumf %94, %95 : vector<128x128xf32>
    %97 = arith.truncf %96 : vector<128x128xf32> to vector<128x128xbf16>
    %98 = arith.index_cast %88 : i32 to index
    %c0_41 = arith.constant 0 : index
    %99 = vector.load %arg4[%98, %c0_41] : memref<512x128xbf16, #tpu.memory_space<vmem>>, vector<128x128xbf16>
    tpu.vector_store %arg4[%98, %c0_41], %97 {strides = array<i32>} : memref<512x128xbf16, #tpu.memory_space<vmem>>, vector<128x128xbf16>,
    %c2_i32_42 = arith.constant 2 : i32
    %c128_i32_43 = arith.constant 128 : i32
    %100 = arith.muli %c2_i32_42, %c128_i32_43 : i32
    %101 = tpu.assume_multiple %100, 128 : i32
    %102 = arith.index_cast %101 : i32 to index
    %c0_44 = arith.constant 0 : index
    %103 = vector.load %arg5[%102, %c0_44] : memref<512x128xf32, #tpu.memory_space<vmem>>, vector<128x128xf32>
    %104 = vector.broadcast %70 : vector<1x128xf32> to vector<128x128xf32>
    %105 = arith.mulf %103, %104 : vector<128x128xf32>
    %106 = vector.broadcast %73 : vector<1x128xf32> to vector<128x128xf32>
    %107 = arith.addf %105, %106 : vector<128x128xf32>
    %cst_45 = arith.constant 0.000000e+00 : f32
    %108 = vector.broadcast %cst_45 : f32 to vector<128x128xf32>
    %109 = arith.maximumf %107, %108 : vector<128x128xf32>
    %110 = arith.truncf %109 : vector<128x128xf32> to vector<128x128xbf16>
    %111 = arith.index_cast %101 : i32 to index
    %c0_46 = arith.constant 0 : index
    %112 = vector.load %arg4[%111, %c0_46] : memref<512x128xbf16, #tpu.memory_space<vmem>>, vector<128x128xbf16>
    tpu.vector_store %arg4[%111, %c0_46], %110 {strides = array<i32>} : memref<512x128xbf16, #tpu.memory_space<vmem>>, vector<128x128xbf16>,
    %c3_i32_47 = arith.constant 3 : i32
    %c128_i32_48 = arith.constant 128 : i32
    %113 = arith.muli %c3_i32_47, %c128_i32_48 : i32
    %114 = tpu.assume_multiple %113, 128 : i32
    %115 = arith.index_cast %114 : i32 to index
    %c0_49 = arith.constant 0 : index
    %116 = vector.load %arg5[%115, %c0_49] : memref<512x128xf32, #tpu.memory_space<vmem>>, vector<128x128xf32>
    %117 = vector.broadcast %70 : vector<1x128xf32> to vector<128x128xf32>
    %118 = arith.mulf %116, %117 : vector<128x128xf32>
    %119 = vector.broadcast %73 : vector<1x128xf32> to vector<128x128xf32>
    %120 = arith.addf %118, %119 : vector<128x128xf32>
    %cst_50 = arith.constant 0.000000e+00 : f32
    %121 = vector.broadcast %cst_50 : f32 to vector<128x128xf32>
    %122 = arith.maximumf %120, %121 : vector<128x128xf32>
    %123 = arith.truncf %122 : vector<128x128xf32> to vector<128x128xbf16>
    %124 = arith.index_cast %114 : i32 to index
    %c0_51 = arith.constant 0 : index
    %125 = vector.load %arg4[%124, %c0_51] : memref<512x128xbf16, #tpu.memory_space<vmem>>, vector<128x128xbf16>
    tpu.vector_store %arg4[%124, %c0_51], %123 {strides = array<i32>} : memref<512x128xbf16, #tpu.memory_space<vmem>>, vector<128x128xbf16>,
    %c4_i32_52 = arith.constant 4 : i32
    return
  }
}

</mosaic_0001>

<llo_original>
// kernel: cnn_block_forward.1
$region0: #{cnn_block_forward.1}
  #allocation0 [shape = 'u32[]', space=smem, size = 0x4, offset = 0x4, fixed_abs, tag = 'smem constant byte address 0x4 - core index']
  #allocation1 [shape = 'u32[144,128]{1,0:T(1,128)}', space=vmem, size = 0x12000, scoped, tag = 'internal scratch']
  #allocation2 [shape = 'f32[512,128]{1,0:T(8,128)}', space=vmem, size = 0x40000, scoped, tag = 'scratch operand']
  %s0 = inlined_call_operand.vmem [shape: bf16[512,48], index: 0, kind: input, shape index: {}]
  %s1 = inlined_call_operand.vmem [shape: bf16[48,128], index: 1, kind: input, shape index: {}]
  %s2 = inlined_call_operand.vmem [shape: f32[1,128], index: 2, kind: input, shape index: {}]
  %s3 = inlined_call_operand.vmem [shape: f32[1,128], index: 3, kind: input, shape index: {}]
  %s4 = inlined_call_operand.vmem [shape: bf16[512,128], index: 4, kind: output, shape index: {}]
  %s5 = sld [smem:[#allocation0]]
  $region26: #{cnn_block_forward.1} parent=0
    _
  %s7 = ssub.s32 1, %s5
  %s8 = scalar_select 0, %s7, %s5
  // Predicated region
  $region2: #{cnn_block_forward.1} parent=0 // pred_check
    _
  $region3: #{cnn_block_forward.1} parent=0 // pred_check_branch
    %10 = sbr.rel (0) target = $region5
  $region4: #{cnn_block_forward.1} parent=0 // pred_region
    _
  $region5: #{cnn_block_forward.1} parent=0 // pred_fallthru
    _
  // Predicated region
  $region6: #{cnn_block_forward.1} parent=0 // pred_check
    _
  $region7: #{cnn_block_forward.1} parent=0 // pred_check_branch
    %12 = sbr.rel (0) target = $region9
  $region8: #{cnn_block_forward.1} parent=0 // pred_region
    _
  $region9: #{cnn_block_forward.1} parent=0 // pred_fallthru
    _
  // Predicated region
  $region10: #{cnn_block_forward.1} parent=0 // pred_check
    _
  $region11: #{cnn_block_forward.1} parent=0 // pred_check_branch
    %14 = sbr.rel (0) target = $region13
  $region12: #{cnn_block_forward.1} parent=0 // pred_region
    _
  $region13: #{cnn_block_forward.1} parent=0 // pred_fallthru
    _
  // Predicated region
  $region14: #{cnn_block_forward.1} parent=0 // pred_check
    _
  $region15: #{cnn_block_forward.1} parent=0 // pred_check_branch
    %16 = sbr.rel (0) target = $region17
  $region16: #{cnn_block_forward.1} parent=0 // pred_region
    _
  $region17: #{cnn_block_forward.1} parent=0 // pred_fallthru
    _
  %v18 = vld [vmem:[%s1] sm:$0xf]
  %v19 = vld [vmem:[%s1 + $0x4] sm:$0xf]
  %v20 = vld [vmem:[%s1 + $0x8] sm:$0xf]
  %v21 = vld [vmem:[%s1 + $0xc] sm:$0xf]
  %v22 = vld [vmem:[%s1 + $0x10] sm:$0xf]
  %v23 = vld [vmem:[%s1 + $0x14] sm:$0xf]
  %v24 = vld [vmem:[%s0] sm:$0xf]
  %v25 = vld [vmem:[%s0 + $0x4] sm:$0xf]
  %v26 = vld [vmem:[%s0 + $0x8] sm:$0xf]
  %v27 = vld [vmem:[%s0 + $0xc] sm:$0xf]
  %v28 = vld [vmem:[%s0 + $0x10] sm:$0xf]
  %v29 = vld [vmem:[%s0 + $0x14] sm:$0xf]
  %v30 = vld [vmem:[%s0 + $0x18] sm:$0xf]
  %v31 = vld [vmem:[%s0 + $0x1c] sm:$0xf]
  %v32 = vld [vmem:[%s0 + $0x20] sm:$0xf]
  %v33 = vld [vmem:[%s0 + $0x24] sm:$0xf]
  %v34 = vld [vmem:[%s0 + $0x28] sm:$0xf]
  %v35 = vld [vmem:[%s0 + $0x2c] sm:$0xf]
  %v36 = vld [vmem:[%s0 + $0x30] sm:$0xf]
  %v37 = vld [vmem:[%s0 + $0x34] sm:$0xf]
  %v38 = vld [vmem:[%s0 + $0x38] sm:$0xf]
  %v39 = vld [vmem:[%s0 + $0x3c] sm:$0xf]
  %v56 = vunpack.c.l.b16 %v24
  %v57 = vunpack.c.l.b16 %v25
  %v58 = vunpack.c.l.b16 %v26
  %v59 = vunpack.c.l.b16 %v27
  %v60 = vunpack.c.l.b16 %v28
  %v61 = vunpack.c.l.b16 %v29
  %v62 = vunpack.c.l.b16 %v30
  %v63 = vunpack.c.l.b16 %v31
  %v64 = vunpack.c.l.b16 %v32
  %v65 = vunpack.c.l.b16 %v33
  %v66 = vunpack.c.l.b16 %v34
  %v67 = vunpack.c.l.b16 %v35
  %v68 = vunpack.c.l.b16 %v36
  %v69 = vunpack.c.l.b16 %v37
  %v70 = vunpack.c.l.b16 %v38
  %v71 = vunpack.c.l.b16 %v39
  %v72 = vpack.c.b16 %v57, %v56
  %v73 = vpack.c.b16 %v59, %v58
  %v74 = vpack.c.b16 %v61, %v60
  %v75 = vpack.c.b16 %v63, %v62
  %v76 = vpack.c.b16 %v65, %v64
  %v77 = vpack.c.b16 %v67, %v66
  %v78 = vpack.c.b16 %v69, %v68
  %v79 = vpack.c.b16 %v71, %v70
  %v86 = vunpack.c.l.b16 %v18
  %v87 = vunpack.c.l.b16 %v19
  %v88 = vunpack.c.l.b16 %v20
  %v89 = vunpack.c.l.b16 %v21
  %v90 = vunpack.c.l.b16 %v22
  %v91 = vunpack.c.l.b16 %v23
  %v92 = vpack.c.b16 %v87, %v86
  %v93 = vpack.c.b16 %v89, %v88
  %v94 = vpack.c.b16 %v91, %v90
  %vm98 = vcmask 392192
  %v100 = vsel %vm98, %v72, 0
  %v103 = vsel %vm98, %v73, 0
  %v106 = vsel %vm98, %v74, 0
  %v109 = vsel %vm98, %v75, 0
  %v112 = vsel %vm98, %v76, 0
  %v115 = vsel %vm98, %v77, 0
  %v118 = vsel %vm98, %v78, 0
  %v121 = vsel %vm98, %v79, 0
  %123 = vmatprep.subr.bf16.mxu0 0
  %124 = vmatpush1.bf16.msra.mxu0 %v92
  %125 = vmatprep.subr.bf16.mxu0 0
  %126 = vmatpush1.bf16.msra.mxu0 %v93
  %127 = vmatprep.subr.bf16.mxu0 0
  %128 = vmatpush1.bf16.msra.mxu0 %v94
  %129 = vmatprep.subr.bf16.mxu0 0
  %130 = vmatpush1.bf16.msra.mxu0 0
  %131 = vmatprep.subr.bf16.mxu0 0
  %132 = vmatpush1.bf16.msra.mxu0 0
  %133 = vmatprep.subr.bf16.mxu0 0
  %134 = vmatpush1.bf16.msra.mxu0 0
  %135 = vmatprep.subr.bf16.mxu0 0
  %136 = vmatpush1.bf16.msra.mxu0 0
  %137 = vmatprep.subr.bf16.mxu0 0
  %138 = vmatpush1.bf16.msra.mxu0 0
  %139 = vmatprep.subr.bf16.mxu0 0
  %140 = vmatpush1.bf16.msra.mxu0 0
  %141 = vmatprep.subr.bf16.mxu0 0
  %142 = vmatpush1.bf16.msra.mxu0 0
  %143 = vmatprep.subr.bf16.mxu0 0
  %144 = vmatpush1.bf16.msra.mxu0 0
  %145 = vmatprep.subr.bf16.mxu0 0
  %146 = vmatpush1.bf16.msra.mxu0 0
  %147 = vmatprep.subr.bf16.mxu0 0
  %148 = vmatpush1.bf16.msra.mxu0 0
  %149 = vmatprep.subr.bf16.mxu0 0
  %150 = vmatpush1.bf16.msra.mxu0 0
  %151 = vmatprep.subr.bf16.mxu0 0
  %152 = vmatpush1.bf16.msra.mxu0 0
  %153 = vmatprep.subr.bf16.mxu0 0
  %154 = vmatpush1.bf16.msra.mxu0 0
  %155 = vmatprep.mubr.bf16.mxu0 0
  %156 = vmatmul.mubr.bf16.gmra.mrb[0].mxu0 %v100
  %v157 = vpop.f32.mrb[0].mxu0
  %v158 = vadd.f32 0.0, %v157
  %v159 = vpop.f32.mrb[0].mxu0
  %v160 = vpop.f32.mrb[0].mxu0
  %v161 = vadd.f32 0.0, %v160
  %v162 = vpop.f32.mrb[0].mxu0
  %163 = vmatprep.mubr.bf16.mxu0 0
  %164 = vmatmul.mubr.bf16.gmra.mrb[0].mxu0 %v103
  %v165 = vpop.f32.mrb[0].mxu0
  %v166 = vadd.f32 0.0, %v165
  %v167 = vpop.f32.mrb[0].mxu0
  %v168 = vpop.f32.mrb[0].mxu0
  %v169 = vadd.f32 0.0, %v168
  %v170 = vpop.f32.mrb[0].mxu0
  %171 = vmatprep.mubr.bf16.mxu0 0
  %172 = vmatmul.mubr.bf16.gmra.mrb[0].mxu0 %v106
  %v173 = vpop.f32.mrb[0].mxu0
  %v174 = vadd.f32 0.0, %v173
  %v175 = vpop.f32.mrb[0].mxu0
  %v176 = vpop.f32.mrb[0].mxu0
  %v177 = vadd.f32 0.0, %v176
  %v178 = vpop.f32.mrb[0].mxu0
  %179 = vmatprep.mubr.bf16.mxu0 0
  %180 = vmatmul.mubr.bf16.gmra.mrb[0].mxu0 %v109
  %v181 = vpop.f32.mrb[0].mxu0
  %v182 = vadd.f32 0.0, %v181
  %v183 = vpop.f32.mrb[0].mxu0
  %v184 = vpop.f32.mrb[0].mxu0
  %v185 = vadd.f32 0.0, %v184
  %v186 = vpop.f32.mrb[0].mxu0
  %187 = vmatprep.mubr.bf16.mxu0 0
  %188 = vmatmul.mubr.bf16.gmra.mrb[0].mxu0 %v112
  %v189 = vpop.f32.mrb[0].mxu0
  %v190 = vadd.f32 0.0, %v189
  %v191 = vpop.f32.mrb[0].mxu0
  %v192 = vpop.f32.mrb[0].mxu0
  %v193 = vadd.f32 0.0, %v192
  %v194 = vpop.f32.mrb[0].mxu0
  %195 = vmatprep.mubr.bf16.mxu0 0
  %196 = vmatmul.mubr.bf16.gmra.mrb[0].mxu0 %v115
  %v197 = vpop.f32.mrb[0].mxu0
  %v198 = vadd.f32 0.0, %v197
  %v199 = vpop.f32.mrb[0].mxu0
  %v200 = vpop.f32.mrb[0].mxu0
  %v201 = vadd.f32 0.0, %v200
  %v202 = vpop.f32.mrb[0].mxu0
  %203 = vmatprep.mubr.bf16.mxu0 0
  %204 = vmatmul.mubr.bf16.gmra.mrb[0].mxu0 %v118
  %v205 = vpop.f32.mrb[0].mxu0
  %v206 = vadd.f32 0.0, %v205
  %v207 = vpop.f32.mrb[0].mxu0
  %v208 = vpop.f32.mrb[0].mxu0
  %v209 = vadd.f32 0.0, %v208
  %v210 = vpop.f32.mrb[0].mxu0
  %211 = vmatprep.mubr.bf16.mxu0 0
  %212 = vmatmul.mubr.bf16.gmra.mrb[0].mxu0 %v121
  %v213 = vpop.f32.mrb[0].mxu0
  %v214 = vadd.f32 0.0, %v213
  %v215 = vpop.f32.mrb[0].mxu0
  %v216 = vpop.f32.mrb[0].mxu0
  %v217 = vadd.f32 0.0, %v216
  %v218 = vpop.f32.mrb[0].mxu0
  %219 = vdwg.mxu0
  %220 = vst [vmem:[#allocation2] sm:$0xff] %v158
  %221 = vst [vmem:[#allocation2 + $0x8] sm:$0xff] %v161
  %222 = vst [vmem:[#allocation2 + $0x10] sm:$0xff] %v166
  %223 = vst [vmem:[#allocation2 + $0x18] sm:$0xff] %v169
  %224 = vst [vmem:[#allocation2 + $0x20] sm:$0xff] %v174
  %225 = vst [vmem:[#allocation2 + $0x28] sm:$0xff] %v177
  %226 = vst [vmem:[#allocation2 + $0x30] sm:$0xff] %v182
  %227 = vst [vmem:[#allocation2 + $0x38] sm:$0xff] %v185
  %228 = vst [vmem:[#allocation2 + $0x40] sm:$0xff] %v190
  %229 = vst [vmem:[#allocation2 + $0x48] sm:$0xff] %v193
  %230 = vst [vmem:[#allocation2 + $0x50] sm:$0xff] %v198
  %231 = vst [vmem:[#allocation2 + $0x58] sm:$0xff] %v201
  %232 = vst [vmem:[#allocation2 + $0x60] sm:$0xff] %v206
  %233 = vst [vmem:[#allocation2 + $0x68] sm:$0xff] %v209
  %234 = vst [vmem:[#allocation2 + $0x70] sm:$0xff] %v214
  %235 = vst [vmem:[#allocation2 + $0x78] sm:$0xff] %v217
  %v236 = vadd.f32 %v158, %v161
  %v237 = vadd.f32 %v236, %v166
  %v238 = vadd.f32 %v237, %v169
  %v239 = vadd.f32 %v238, %v174
  %v240 = vadd.f32 %v239, %v177
  %v241 = vadd.f32 %v240, %v182
  %v242 = vadd.f32 %v241, %v185
  %v243 = vadd.f32 %v242, %v190
  %v244 = vadd.f32 %v243, %v193
  %v245 = vadd.f32 %v244, %v198
  %v246 = vadd.f32 %v245, %v201
  %v247 = vadd.f32 %v246, %v206
  %v248 = vadd.f32 %v247, %v209
  %v249 = vadd.f32 %v248, %v214
  %v250 = vadd.f32 %v249, %v217
  %v251 = vrot.slane %v250, 4
  %v252 = vadd.f32 %v250, %v251
  %v253 = vrot.slane %v252, 2
  %v254 = vadd.f32 %v252, %v253
  %v255 = vrot.slane %v254, 1
  %v256 = vadd.f32 %v254, %v255
  %v257 = vadd.f32 %v256, 0.0
  %v258 = vmul.f32 %v158, %v158
  %v259 = vmul.f32 %v161, %v161
  %v260 = vmul.f32 %v166, %v166
  %v261 = vmul.f32 %v169, %v169
  %v262 = vmul.f32 %v174, %v174
  %v263 = vmul.f32 %v177, %v177
  %v264 = vmul.f32 %v182, %v182
  %v265 = vmul.f32 %v185, %v185
  %v266 = vmul.f32 %v190, %v190
  %v267 = vmul.f32 %v193, %v193
  %v268 = vmul.f32 %v198, %v198
  %v269 = vmul.f32 %v201, %v201
  %v270 = vmul.f32 %v206, %v206
  %v271 = vmul.f32 %v209, %v209
  %v272 = vmul.f32 %v214, %v214
  %v273 = vmul.f32 %v217, %v217
  %v274 = vadd.f32 %v258, %v259
  %v275 = vadd.f32 %v274, %v260
  %v276 = vadd.f32 %v275, %v261
  %v277 = vadd.f32 %v276, %v262
  %v278 = vadd.f32 %v277, %v263
  %v279 = vadd.f32 %v278, %v264
  %v280 = vadd.f32 %v279, %v265
  %v281 = vadd.f32 %v280, %v266
  %v282 = vadd.f32 %v281, %v267
  %v283 = vadd.f32 %v282, %v268
  %v284 = vadd.f32 %v283, %v269
  %v285 = vadd.f32 %v284, %v270
  %v286 = vadd.f32 %v285, %v271
  %v287 = vadd.f32 %v286, %v272
  %v288 = vadd.f32 %v287, %v273
  %v289 = vrot.slane %v288, 4
  %v290 = vadd.f32 %v288, %v289
  %v291 = vrot.slane %v290, 2
  %v292 = vadd.f32 %v290, %v291
  %v293 = vrot.slane %v292, 1
  %v294 = vadd.f32 %v292, %v293
  %v295 = vadd.f32 %v294, 0.0
  %s296 = scalar_lea.vmem %s0, 64
  %v297 = vld [vmem:[%s296] sm:$0xf]
  %v298 = vld [vmem:[%s296 + $0x4] sm:$0xf]
  %v299 = vld [vmem:[%s296 + $0x8] sm:$0xf]
  %v300 = vld [vmem:[%s296 + $0xc] sm:$0xf]
  %v301 = vld [vmem:[%s296 + $0x10] sm:$0xf]
  %v302 = vld [vmem:[%s296 + $0x14] sm:$0xf]
  %v303 = vld [vmem:[%s296 + $0x18] sm:$0xf]
  %v304 = vld [vmem:[%s296 + $0x1c] sm:$0xf]
  %v305 = vld [vmem:[%s296 + $0x20] sm:$0xf]
  %v306 = vld [vmem:[%s296 + $0x24] sm:$0xf]
  %v307 = vld [vmem:[%s296 + $0x28] sm:$0xf]
  %v308 = vld [vmem:[%s296 + $0x2c] sm:$0xf]
  %v309 = vld [vmem:[%s296 + $0x30] sm:$0xf]
  %v310 = vld [vmem:[%s296 + $0x34] sm:$0xf]
  %v311 = vld [vmem:[%s296 + $0x38] sm:$0xf]
  %v312 = vld [vmem:[%s296 + $0x3c] sm:$0xf]
  %v329 = vunpack.c.l.b16 %v297
  %v330 = vunpack.c.l.b16 %v298
  %v331 = vunpack.c.l.b16 %v299
  %v332 = vunpack.c.l.b16 %v300
  %v333 = vunpack.c.l.b16 %v301
  %v334 = vunpack.c.l.b16 %v302
  %v335 = vunpack.c.l.b16 %v303
  %v336 = vunpack.c.l.b16 %v304
  %v337 = vunpack.c.l.b16 %v305
  %v338 = vunpack.c.l.b16 %v306
  %v339 = vunpack.c.l.b16 %v307
  %v340 = vunpack.c.l.b16 %v308
  %v341 = vunpack.c.l.b16 %v309
  %v342 = vunpack.c.l.b16 %v310
  %v343 = vunpack.c.l.b16 %v311
  %v344 = vunpack.c.l.b16 %v312
  %v345 = vpack.c.b16 %v330, %v329
  %v346 = vpack.c.b16 %v332, %v331
  %v347 = vpack.c.b16 %v334, %v333
  %v348 = vpack.c.b16 %v336, %v335
  %v349 = vpack.c.b16 %v338, %v337
  %v350 = vpack.c.b16 %v340, %v339
  %v351 = vpack.c.b16 %v342, %v341
  %v352 = vpack.c.b16 %v344, %v343
  %v354 = vsel %vm98, %v345, 0
  %v357 = vsel %vm98, %v346, 0
  %v360 = vsel %vm98, %v347, 0
  %v363 = vsel %vm98, %v348, 0
  %v366 = vsel %vm98, %v349, 0
  %v369 = vsel %vm98, %v350, 0
  %v372 = vsel %vm98, %v351, 0
  %v375 = vsel %vm98, %v352, 0
  %377 = vmatprep.subr.bf16.mxu0 0
  %378 = vmatpush1.bf16.msra.mxu0 %v92
  %379 = vmatprep.subr.bf16.mxu0 0
  %380 = vmatpush1.bf16.msra.mxu0 %v93
  %381 = vmatprep.subr.bf16.mxu0 0
  %382 = vmatpush1.bf16.msra.mxu0 %v94
  %383 = vmatprep.subr.bf16.mxu0 0
  %384 = vmatpush1.bf16.msra.mxu0 0
  %385 = vmatprep.subr.bf16.mxu0 0
  %386 = vmatpush1.bf16.msra.mxu0 0
  %387 = vmatprep.subr.bf16.mxu0 0
  %388 = vmatpush1.bf16.msra.mxu0 0
  %389 = vmatprep.subr.bf16.mxu0 0
  %390 = vmatpush1.bf16.msra.mxu0 0
  %391 = vmatprep.subr.bf16.mxu0 0
  %392 = vmatpush1.bf16.msra.mxu0 0
  %393 = vmatprep.subr.bf16.mxu0 0
  %394 = vmatpush1.bf16.msra.mxu0 0
  %395 = vmatprep.subr.bf16.mxu0 0
  %396 = vmatpush1.bf16.msra.mxu0 0
  %397 = vmatprep.subr.bf16.mxu0 0
  %398 = vmatpush1.bf16.msra.mxu0 0
  %399 = vmatprep.subr.bf16.mxu0 0
  %400 = vmatpush1.bf16.msra.mxu0 0
  %401 = vmatprep.subr.bf16.mxu0 0
  %402 = vmatpush1.bf16.msra.mxu0 0
  %403 = vmatprep.subr.bf16.mxu0 0
  %404 = vmatpush1.bf16.msra.mxu0 0
  %405 = vmatprep.subr.bf16.mxu0 0
  %406 = vmatpush1.bf16.msra.mxu0 0
  %407 = vmatprep.subr.bf16.mxu0 0
  %408 = vmatpush1.bf16.msra.mxu0 0
  %409 = vmatprep.mubr.bf16.mxu0 0
  %410 = vmatmul.mubr.bf16.gmra.mrb[0].mxu0 %v354
  %v411 = vpop.f32.mrb[0].mxu0
  %v412 = vadd.f32 0.0, %v411
  %v413 = vpop.f32.mrb[0].mxu0
  %v414 = vpop.f32.mrb[0].mxu0
  %v415 = vadd.f32 0.0, %v414
  %v416 = vpop.f32.mrb[0].mxu0
  %417 = vmatprep.mubr.bf16.mxu0 0
  %418 = vmatmul.mubr.bf16.gmra.mrb[0].mxu0 %v357
  %v419 = vpop.f32.mrb[0].mxu0
  %v420 = vadd.f32 0.0, %v419
  %v421 = vpop.f32.mrb[0].mxu0
  %v422 = vpop.f32.mrb[0].mxu0
  %v423 = vadd.f32 0.0, %v422
  %v424 = vpop.f32.mrb[0].mxu0
  %425 = vmatprep.mubr.bf16.mxu0 0
  %426 = vmatmul.mubr.bf16.gmra.mrb[0].mxu0 %v360
  %v427 = vpop.f32.mrb[0].mxu0
  %v428 = vadd.f32 0.0, %v427
  %v429 = vpop.f32.mrb[0].mxu0
  %v430 = vpop.f32.mrb[0].mxu0
  %v431 = vadd.f32 0.0, %v430
  %v432 = vpop.f32.mrb[0].mxu0
  %433 = vmatprep.mubr.bf16.mxu0 0
  %434 = vmatmul.mubr.bf16.gmra.mrb[0].mxu0 %v363
  %v435 = vpop.f32.mrb[0].mxu0
  %v436 = vadd.f32 0.0, %v435
  %v437 = vpop.f32.mrb[0].mxu0
  %v438 = vpop.f32.mrb[0].mxu0
  %v439 = vadd.f32 0.0, %v438
  %v440 = vpop.f32.mrb[0].mxu0
  %441 = vmatprep.mubr.bf16.mxu0 0
  %442 = vmatmul.mubr.bf16.gmra.mrb[0].mxu0 %v366
  %v443 = vpop.f32.mrb[0].mxu0
  %v444 = vadd.f32 0.0, %v443
  %v445 = vpop.f32.mrb[0].mxu0
  %v446 = vpop.f32.mrb[0].mxu0
  %v447 = vadd.f32 0.0, %v446
  %v448 = vpop.f32.mrb[0].mxu0
  %449 = vmatprep.mubr.bf16.mxu0 0
  %450 = vmatmul.mubr.bf16.gmra.mrb[0].mxu0 %v369
  %v451 = vpop.f32.mrb[0].mxu0
  %v452 = vadd.f32 0.0, %v451
  %v453 = vpop.f32.mrb[0].mxu0
  %v454 = vpop.f32.mrb[0].mxu0
  %v455 = vadd.f32 0.0, %v454
  %v456 = vpop.f32.mrb[0].mxu0
  %457 = vmatprep.mubr.bf16.mxu0 0
  %458 = vmatmul.mubr.bf16.gmra.mrb[0].mxu0 %v372
  %v459 = vpop.f32.mrb[0].mxu0
  %v460 = vadd.f32 0.0, %v459
  %v461 = vpop.f32.mrb[0].mxu0
  %v462 = vpop.f32.mrb[0].mxu0
  %v463 = vadd.f32 0.0, %v462
  %v464 = vpop.f32.mrb[0].mxu0
  %465 = vmatprep.mubr.bf16.mxu0 0
  %466 = vmatmul.mubr.bf16.gmra.mrb[0].mxu0 %v375
  %v467 = vpop.f32.mrb[0].mxu0
  %v468 = vadd.f32 0.0, %v467
  %v469 = vpop.f32.mrb[0].mxu0
  %v470 = vpop.f32.mrb[0].mxu0
  %v471 = vadd.f32 0.0, %v470
  %v472 = vpop.f32.mrb[0].mxu0
  %473 = vdwg.mxu0
  %s474 = scalar_lea.vmem [#allocation2], 128
  %475 = vst [vmem:[%s474] sm:$0xff] %v412
  %476 = vst [vmem:[%s474 + $0x8] sm:$0xff] %v415
  %477 = vst [vmem:[%s474 + $0x10] sm:$0xff] %v420
  %478 = vst [vmem:[%s474 + $0x18] sm:$0xff] %v423
  %479 = vst [vmem:[%s474 + $0x20] sm:$0xff] %v428
  %480 = vst [vmem:[%s474 + $0x28] sm:$0xff] %v431
  %481 = vst [vmem:[%s474 + $0x30] sm:$0xff] %v436
  %482 = vst [vmem:[%s474 + $0x38] sm:$0xff] %v439
  %483 = vst [vmem:[%s474 + $0x40] sm:$0xff] %v444
  %484 = vst [vmem:[%s474 + $0x48] sm:$0xff] %v447
  %485 = vst [vmem:[%s474 + $0x50] sm:$0xff] %v452
  %486 = vst [vmem:[%s474 + $0x58] sm:$0xff] %v455
  %487 = vst [vmem:[%s474 + $0x60] sm:$0xff] %v460
  %488 = vst [vmem:[%s474 + $0x68] sm:$0xff] %v463
  %489 = vst [vmem:[%s474 + $0x70] sm:$0xff] %v468
  %490 = vst [vmem:[%s474 + $0x78] sm:$0xff] %v471
  %v491 = vadd.f32 %v412, %v415
  %v492 = vadd.f32 %v491, %v420
  %v493 = vadd.f32 %v492, %v423
  %v494 = vadd.f32 %v493, %v428
  %v495 = vadd.f32 %v494, %v431
  %v496 = vadd.f32 %v495, %v436
  %v497 = vadd.f32 %v496, %v439
  %v498 = vadd.f32 %v497, %v444
  %v499 = vadd.f32 %v498, %v447
  %v500 = vadd.f32 %v499, %v452
  %v501 = vadd.f32 %v500, %v455
  %v502 = vadd.f32 %v501, %v460
  %v503 = vadd.f32 %v502, %v463
  %v504 = vadd.f32 %v503, %v468
  %v505 = vadd.f32 %v504, %v471
  %v506 = vrot.slane %v505, 4
  %v507 = vadd.f32 %v505, %v506
  %v508 = vrot.slane %v507, 2
  %v509 = vadd.f32 %v507, %v508
  %v510 = vrot.slane %v509, 1
  %v511 = vadd.f32 %v509, %v510
  %v512 = vadd.f32 %v257, %v511
  %v513 = vmul.f32 %v412, %v412
  %v514 = vmul.f32 %v415, %v415
  %v515 = vmul.f32 %v420, %v420
  %v516 = vmul.f32 %v423, %v423
  %v517 = vmul.f32 %v428, %v428
  %v518 = vmul.f32 %v431, %v431
  %v519 = vmul.f32 %v436, %v436
  %v520 = vmul.f32 %v439, %v439
  %v521 = vmul.f32 %v444, %v444
  %v522 = vmul.f32 %v447, %v447
  %v523 = vmul.f32 %v452, %v452
  %v524 = vmul.f32 %v455, %v455
  %v525 = vmul.f32 %v460, %v460
  %v526 = vmul.f32 %v463, %v463
  %v527 = vmul.f32 %v468, %v468
  %v528 = vmul.f32 %v471, %v471
  %v529 = vadd.f32 %v513, %v514
  %v530 = vadd.f32 %v529, %v515
  %v531 = vadd.f32 %v530, %v516
  %v532 = vadd.f32 %v531, %v517
  %v533 = vadd.f32 %v532, %v518
  %v534 = vadd.f32 %v533, %v519
  %v535 = vadd.f32 %v534, %v520
  %v536 = vadd.f32 %v535, %v521
  %v537 = vadd.f32 %v536, %v522
  %v538 = vadd.f32 %v537, %v523
  %v539 = vadd.f32 %v538, %v524
  %v540 = vadd.f32 %v539, %v525
  %v541 = vadd.f32 %v540, %v526
  %v542 = vadd.f32 %v541, %v527
  %v543 = vadd.f32 %v542, %v528
  %v544 = vrot.slane %v543, 4
  %v545 = vadd.f32 %v543, %v544
  %v546 = vrot.slane %v545, 2
  %v547 = vadd.f32 %v545, %v546
  %v548 = vrot.slane %v547, 1
  %v549 = vadd.f32 %v547, %v548
  %v550 = vadd.f32 %v295, %v549
  %s551 = scalar_lea.vmem %s0, 128
  %v552 = vld [vmem:[%s551] sm:$0xf]
  %v553 = vld [vmem:[%s551 + $0x4] sm:$0xf]
  %v554 = vld [vmem:[%s551 + $0x8] sm:$0xf]
  %v555 = vld [vmem:[%s551 + $0xc] sm:$0xf]
  %v556 = vld [vmem:[%s551 + $0x10] sm:$0xf]
  %v557 = vld [vmem:[%s551 + $0x14] sm:$0xf]
  %v558 = vld [vmem:[%s551 + $0x18] sm:$0xf]
  %v559 = vld [vmem:[%s551 + $0x1c] sm:$0xf]
  %v560 = vld [vmem:[%s551 + $0x20] sm:$0xf]
  %v561 = vld [vmem:[%s551 + $0x24] sm:$0xf]
  %v562 = vld [vmem:[%s551 + $0x28] sm:$0xf]
  %v563 = vld [vmem:[%s551 + $0x2c] sm:$0xf]
  %v564 = vld [vmem:[%s551 + $0x30] sm:$0xf]
  %v565 = vld [vmem:[%s551 + $0x34] sm:$0xf]
  %v566 = vld [vmem:[%s551 + $0x38] sm:$0xf]
  %v567 = vld [vmem:[%s551 + $0x3c] sm:$0xf]
  %v584 = vunpack.c.l.b16 %v552
  %v585 = vunpack.c.l.b16 %v553
  %v586 = vunpack.c.l.b16 %v554
  %v587 = vunpack.c.l.b16 %v555
  %v588 = vunpack.c.l.b16 %v556
  %v589 = vunpack.c.l.b16 %v557
  %v590 = vunpack.c.l.b16 %v558
  %v591 = vunpack.c.l.b16 %v559
  %v592 = vunpack.c.l.b16 %v560
  %v593 = vunpack.c.l.b16 %v561
  %v594 = vunpack.c.l.b16 %v562
  %v595 = vunpack.c.l.b16 %v563
  %v596 = vunpack.c.l.b16 %v564
  %v597 = vunpack.c.l.b16 %v565
  %v598 = vunpack.c.l.b16 %v566
  %v599 = vunpack.c.l.b16 %v567
  %v600 = vpack.c.b16 %v585, %v584
  %v601 = vpack.c.b16 %v587, %v586
  %v602 = vpack.c.b16 %v589, %v588
  %v603 = vpack.c.b16 %v591, %v590
  %v604 = vpack.c.b16 %v593, %v592
  %v605 = vpack.c.b16 %v595, %v594
  %v606 = vpack.c.b16 %v597, %v596
  %v607 = vpack.c.b16 %v599, %v598
  %v609 = vsel %vm98, %v600, 0
  %v612 = vsel %vm98, %v601, 0
  %v615 = vsel %vm98, %v602, 0
  %v618 = vsel %vm98, %v603, 0
  %v621 = vsel %vm98, %v604, 0
  %v624 = vsel %vm98, %v605, 0
  %v627 = vsel %vm98, %v606, 0
  %v630 = vsel %vm98, %v607, 0
  %632 = vmatprep.subr.bf16.mxu0 0
  %633 = vmatpush1.bf16.msra.mxu0 %v92
  %634 = vmatprep.subr.bf16.mxu0 0
  %635 = vmatpush1.bf16.msra.mxu0 %v93
  %636 = vmatprep.subr.bf16.mxu0 0
  %637 = vmatpush1.bf16.msra.mxu0 %v94
  %638 = vmatprep.subr.bf16.mxu0 0
  %639 = vmatpush1.bf16.msra.mxu0 0
  %640 = vmatprep.subr.bf16.mxu0 0
  %641 = vmatpush1.bf16.msra.mxu0 0
  %642 = vmatprep.subr.bf16.mxu0 0
  %643 = vmatpush1.bf16.msra.mxu0 0
  %644 = vmatprep.subr.bf16.mxu0 0
  %645 = vmatpush1.bf16.msra.mxu0 0
  %646 = vmatprep.subr.bf16.mxu0 0
  %647 = vmatpush1.bf16.msra.mxu0 0
  %648 = vmatprep.subr.bf16.mxu0 0
  %649 = vmatpush1.bf16.msra.mxu0 0
  %650 = vmatprep.subr.bf16.mxu0 0
  %651 = vmatpush1.bf16.msra.mxu0 0
  %652 = vmatprep.subr.bf16.mxu0 0
  %653 = vmatpush1.bf16.msra.mxu0 0
  %654 = vmatprep.subr.bf16.mxu0 0
  %655 = vmatpush1.bf16.msra.mxu0 0
  %656 = vmatprep.subr.bf16.mxu0 0
  %657 = vmatpush1.bf16.msra.mxu0 0
  %658 = vmatprep.subr.bf16.mxu0 0
  %659 = vmatpush1.bf16.msra.mxu0 0
  %660 = vmatprep.subr.bf16.mxu0 0
  %661 = vmatpush1.bf16.msra.mxu0 0
  %662 = vmatprep.subr.bf16.mxu0 0
  %663 = vmatpush1.bf16.msra.mxu0 0
  %664 = vmatprep.mubr.bf16.mxu0 0
  %665 = vmatmul.mubr.bf16.gmra.mrb[0].mxu0 %v609
  %v666 = vpop.f32.mrb[0].mxu0
  %v667 = vadd.f32 0.0, %v666
  %v668 = vpop.f32.mrb[0].mxu0
  %v669 = vpop.f32.mrb[0].mxu0
  %v670 = vadd.f32 0.0, %v669
  %v671 = vpop.f32.mrb[0].mxu0
  %672 = vmatprep.mubr.bf16.mxu0 0
  %673 = vmatmul.mubr.bf16.gmra.mrb[0].mxu0 %v612
  %v674 = vpop.f32.mrb[0].mxu0
  %v675 = vadd.f32 0.0, %v674
  %v676 = vpop.f32.mrb[0].mxu0
  %v677 = vpop.f32.mrb[0].mxu0
  %v678 = vadd.f32 0.0, %v677
  %v679 = vpop.f32.mrb[0].mxu0
  %680 = vmatprep.mubr.bf16.mxu0 0
  %681 = vmatmul.mubr.bf16.gmra.mrb[0].mxu0 %v615
  %v682 = vpop.f32.mrb[0].mxu0
  %v683 = vadd.f32 0.0, %v682
  %v684 = vpop.f32.mrb[0].mxu0
  %v685 = vpop.f32.mrb[0].mxu0
  %v686 = vadd.f32 0.0, %v685
  %v687 = vpop.f32.mrb[0].mxu0
  %688 = vmatprep.mubr.bf16.mxu0 0
  %689 = vmatmul.mubr.bf16.gmra.mrb[0].mxu0 %v618
  %v690 = vpop.f32.mrb[0].mxu0
  %v691 = vadd.f32 0.0, %v690
  %v692 = vpop.f32.mrb[0].mxu0
  %v693 = vpop.f32.mrb[0].mxu0
  %v694 = vadd.f32 0.0, %v693
  %v695 = vpop.f32.mrb[0].mxu0
  %696 = vmatprep.mubr.bf16.mxu0 0
  %697 = vmatmul.mubr.bf16.gmra.mrb[0].mxu0 %v621
  %v698 = vpop.f32.mrb[0].mxu0
  %v699 = vadd.f32 0.0, %v698
  %v700 = vpop.f32.mrb[0].mxu0
  %v701 = vpop.f32.mrb[0].mxu0
  %v702 = vadd.f32 0.0, %v701
  %v703 = vpop.f32.mrb[0].mxu0
  %704 = vmatprep.mubr.bf16.mxu0 0
  %705 = vmatmul.mubr.bf16.gmra.mrb[0].mxu0 %v624
  %v706 = vpop.f32.mrb[0].mxu0
  %v707 = vadd.f32 0.0, %v706
  %v708 = vpop.f32.mrb[0].mxu0
  %v709 = vpop.f32.mrb[0].mxu0
  %v710 = vadd.f32 0.0, %v709
  %v711 = vpop.f32.mrb[0].mxu0
  %712 = vmatprep.mubr.bf16.mxu0 0
  %713 = vmatmul.mubr.bf16.gmra.mrb[0].mxu0 %v627
  %v714 = vpop.f32.mrb[0].mxu0
  %v715 = vadd.f32 0.0, %v714
  %v716 = vpop.f32.mrb[0].mxu0
  %v717 = vpop.f32.mrb[0].mxu0
  %v718 = vadd.f32 0.0, %v717
  %v719 = vpop.f32.mrb[0].mxu0
  %720 = vmatprep.mubr.bf16.mxu0 0
  %721 = vmatmul.mubr.bf16.gmra.mrb[0].mxu0 %v630
  %v722 = vpop.f32.mrb[0].mxu0
  %v723 = vadd.f32 0.0, %v722
  %v724 = vpop.f32.mrb[0].mxu0
  %v725 = vpop.f32.mrb[0].mxu0
  %v726 = vadd.f32 0.0, %v725
  %v727 = vpop.f32.mrb[0].mxu0
  %728 = vdwg.mxu0
  %s729 = scalar_lea.vmem [#allocation2], 256
  %730 = vst [vmem:[%s729] sm:$0xff] %v667
  %731 = vst [vmem:[%s729 + $0x8] sm:$0xff] %v670
  %732 = vst [vmem:[%s729 + $0x10] sm:$0xff] %v675
  %733 = vst [vmem:[%s729 + $0x18] sm:$0xff] %v678
  %734 = vst [vmem:[%s729 + $0x20] sm:$0xff] %v683
  %735 = vst [vmem:[%s729 + $0x28] sm:$0xff] %v686
  %736 = vst [vmem:[%s729 + $0x30] sm:$0xff] %v691
  %737 = vst [vmem:[%s729 + $0x38] sm:$0xff] %v694
  %738 = vst [vmem:[%s729 + $0x40] sm:$0xff] %v699
  %739 = vst [vmem:[%s729 + $0x48] sm:$0xff] %v702
  %740 = vst [vmem:[%s729 + $0x50] sm:$0xff] %v707
  %741 = vst [vmem:[%s729 + $0x58] sm:$0xff] %v710
  %742 = vst [vmem:[%s729 + $0x60] sm:$0xff] %v715
  %743 = vst [vmem:[%s729 + $0x68] sm:$0xff] %v718
  %744 = vst [vmem:[%s729 + $0x70] sm:$0xff] %v723
  %745 = vst [vmem:[%s729 + $0x78] sm:$0xff] %v726
  %v746 = vadd.f32 %v667, %v670
  %v747 = vadd.f32 %v746, %v675
  %v748 = vadd.f32 %v747, %v678
  %v749 = vadd.f32 %v748, %v683
  %v750 = vadd.f32 %v749, %v686
  %v751 = vadd.f32 %v750, %v691
  %v752 = vadd.f32 %v751, %v694
  %v753 = vadd.f32 %v752, %v699
  %v754 = vadd.f32 %v753, %v702
  %v755 = vadd.f32 %v754, %v707
  %v756 = vadd.f32 %v755, %v710
  %v757 = vadd.f32 %v756, %v715
  %v758 = vadd.f32 %v757, %v718
  %v759 = vadd.f32 %v758, %v723
  %v760 = vadd.f32 %v759, %v726
  %v761 = vrot.slane %v760, 4
  %v762 = vadd.f32 %v760, %v761
  %v763 = vrot.slane %v762, 2
  %v764 = vadd.f32 %v762, %v763
  %v765 = vrot.slane %v764, 1
  %v766 = vadd.f32 %v764, %v765
  %v767 = vadd.f32 %v512, %v766
  %v768 = vmul.f32 %v667, %v667
  %v769 = vmul.f32 %v670, %v670
  %v770 = vmul.f32 %v675, %v675
  %v771 = vmul.f32 %v678, %v678
  %v772 = vmul.f32 %v683, %v683
  %v773 = vmul.f32 %v686, %v686
  %v774 = vmul.f32 %v691, %v691
  %v775 = vmul.f32 %v694, %v694
  %v776 = vmul.f32 %v699, %v699
  %v777 = vmul.f32 %v702, %v702
  %v778 = vmul.f32 %v707, %v707
  %v779 = vmul.f32 %v710, %v710
  %v780 = vmul.f32 %v715, %v715
  %v781 = vmul.f32 %v718, %v718
  %v782 = vmul.f32 %v723, %v723
  %v783 = vmul.f32 %v726, %v726
  %v784 = vadd.f32 %v768, %v769
  %v785 = vadd.f32 %v784, %v770
  %v786 = vadd.f32 %v785, %v771
  %v787 = vadd.f32 %v786, %v772
  %v788 = vadd.f32 %v787, %v773
  %v789 = vadd.f32 %v788, %v774
  %v790 = vadd.f32 %v789, %v775
  %v791 = vadd.f32 %v790, %v776
  %v792 = vadd.f32 %v791, %v777
  %v793 = vadd.f32 %v792, %v778
  %v794 = vadd.f32 %v793, %v779
  %v795 = vadd.f32 %v794, %v780
  %v796 = vadd.f32 %v795, %v781
  %v797 = vadd.f32 %v796, %v782
  %v798 = vadd.f32 %v797, %v783
  %v799 = vrot.slane %v798, 4
  %v800 = vadd.f32 %v798, %v799
  %v801 = vrot.slane %v800, 2
  %v802 = vadd.f32 %v800, %v801
  %v803 = vrot.slane %v802, 1
  %v804 = vadd.f32 %v802, %v803
  %v805 = vadd.f32 %v550, %v804
  %s806 = scalar_lea.vmem %s0, 192
  %v807 = vld [vmem:[%s806] sm:$0xf]
  %v808 = vld [vmem:[%s806 + $0x4] sm:$0xf]
  %v809 = vld [vmem:[%s806 + $0x8] sm:$0xf]
  %v810 = vld [vmem:[%s806 + $0xc] sm:$0xf]
  %v811 = vld [vmem:[%s806 + $0x10] sm:$0xf]
  %v812 = vld [vmem:[%s806 + $0x14] sm:$0xf]
  %v813 = vld [vmem:[%s806 + $0x18] sm:$0xf]
  %v814 = vld [vmem:[%s806 + $0x1c] sm:$0xf]
  %v815 = vld [vmem:[%s806 + $0x20] sm:$0xf]
  %v816 = vld [vmem:[%s806 + $0x24] sm:$0xf]
  %v817 = vld [vmem:[%s806 + $0x28] sm:$0xf]
  %v818 = vld [vmem:[%s806 + $0x2c] sm:$0xf]
  %v819 = vld [vmem:[%s806 + $0x30] sm:$0xf]
  %v820 = vld [vmem:[%s806 + $0x34] sm:$0xf]
  %v821 = vld [vmem:[%s806 + $0x38] sm:$0xf]
  %v822 = vld [vmem:[%s806 + $0x3c] sm:$0xf]
  %v839 = vunpack.c.l.b16 %v807
  %v840 = vunpack.c.l.b16 %v808
  %v841 = vunpack.c.l.b16 %v809
  %v842 = vunpack.c.l.b16 %v810
  %v843 = vunpack.c.l.b16 %v811
  %v844 = vunpack.c.l.b16 %v812
  %v845 = vunpack.c.l.b16 %v813
  %v846 = vunpack.c.l.b16 %v814
  %v847 = vunpack.c.l.b16 %v815
  %v848 = vunpack.c.l.b16 %v816
  %v849 = vunpack.c.l.b16 %v817
  %v850 = vunpack.c.l.b16 %v818
  %v851 = vunpack.c.l.b16 %v819
  %v852 = vunpack.c.l.b16 %v820
  %v853 = vunpack.c.l.b16 %v821
  %v854 = vunpack.c.l.b16 %v822
  %v855 = vpack.c.b16 %v840, %v839
  %v856 = vpack.c.b16 %v842, %v841
  %v857 = vpack.c.b16 %v844, %v843
  %v858 = vpack.c.b16 %v846, %v845
  %v859 = vpack.c.b16 %v848, %v847
  %v860 = vpack.c.b16 %v850, %v849
  %v861 = vpack.c.b16 %v852, %v851
  %v862 = vpack.c.b16 %v854, %v853
  %v864 = vsel %vm98, %v855, 0
  %v867 = vsel %vm98, %v856, 0
  %v870 = vsel %vm98, %v857, 0
  %v873 = vsel %vm98, %v858, 0
  %v876 = vsel %vm98, %v859, 0
  %v879 = vsel %vm98, %v860, 0
  %v882 = vsel %vm98, %v861, 0
  %v885 = vsel %vm98, %v862, 0
  %887 = vmatprep.subr.bf16.mxu0 0
  %888 = vmatpush1.bf16.msra.mxu0 %v92
  %889 = vmatprep.subr.bf16.mxu0 0
  %890 = vmatpush1.bf16.msra.mxu0 %v93
  %891 = vmatprep.subr.bf16.mxu0 0
  %892 = vmatpush1.bf16.msra.mxu0 %v94
  %893 = vmatprep.subr.bf16.mxu0 0
  %894 = vmatpush1.bf16.msra.mxu0 0
  %895 = vmatprep.subr.bf16.mxu0 0
  %896 = vmatpush1.bf16.msra.mxu0 0
  %897 = vmatprep.subr.bf16.mxu0 0
  %898 = vmatpush1.bf16.msra.mxu0 0
  %899 = vmatprep.subr.bf16.mxu0 0
  %900 = vmatpush1.bf16.msra.mxu0 0
  %901 = vmatprep.subr.bf16.mxu0 0
  %902 = vmatpush1.bf16.msra.mxu0 0
  %903 = vmatprep.subr.bf16.mxu0 0
  %904 = vmatpush1.bf16.msra.mxu0 0
  %905 = vmatprep.subr.bf16.mxu0 0
  %906 = vmatpush1.bf16.msra.mxu0 0
  %907 = vmatprep.subr.bf16.mxu0 0
  %908 = vmatpush1.bf16.msra.mxu0 0
  %909 = vmatprep.subr.bf16.mxu0 0
  %910 = vmatpush1.bf16.msra.mxu0 0
  %911 = vmatprep.subr.bf16.mxu0 0
  %912 = vmatpush1.bf16.msra.mxu0 0
  %913 = vmatprep.subr.bf16.mxu0 0
  %914 = vmatpush1.bf16.msra.mxu0 0
  %915 = vmatprep.subr.bf16.mxu0 0
  %916 = vmatpush1.bf16.msra.mxu0 0
  %917 = vmatprep.subr.bf16.mxu0 0
  %918 = vmatpush1.bf16.msra.mxu0 0
  %919 = vmatprep.mubr.bf16.mxu0 0
  %920 = vmatmul.mubr.bf16.gmra.mrb[0].mxu0 %v864
  %v921 = vpop.f32.mrb[0].mxu0
  %v922 = vadd.f32 0.0, %v921
  %v923 = vpop.f32.mrb[0].mxu0
  %v924 = vpop.f32.mrb[0].mxu0
  %v925 = vadd.f32 0.0, %v924
  %v926 = vpop.f32.mrb[0].mxu0
  %927 = vmatprep.mubr.bf16.mxu0 0
  %928 = vmatmul.mubr.bf16.gmra.mrb[0].mxu0 %v867
  %v929 = vpop.f32.mrb[0].mxu0
  %v930 = vadd.f32 0.0, %v929
  %v931 = vpop.f32.mrb[0].mxu0
  %v932 = vpop.f32.mrb[0].mxu0
  %v933 = vadd.f32 0.0, %v932
  %v934 = vpop.f32.mrb[0].mxu0
  %935 = vmatprep.mubr.bf16.mxu0 0
  %936 = vmatmul.mubr.bf16.gmra.mrb[0].mxu0 %v870
  %v937 = vpop.f32.mrb[0].mxu0
  %v938 = vadd.f32 0.0, %v937
  %v939 = vpop.f32.mrb[0].mxu0
  %v940 = vpop.f32.mrb[0].mxu0
  %v941 = vadd.f32 0.0, %v940
  %v942 = vpop.f32.mrb[0].mxu0
  %943 = vmatprep.mubr.bf16.mxu0 0
  %944 = vmatmul.mubr.bf16.gmra.mrb[0].mxu0 %v873
  %v945 = vpop.f32.mrb[0].mxu0
  %v946 = vadd.f32 0.0, %v945
  %v947 = vpop.f32.mrb[0].mxu0
  %v948 = vpop.f32.mrb[0].mxu0
  %v949 = vadd.f32 0.0, %v948
  %v950 = vpop.f32.mrb[0].mxu0
  %951 = vmatprep.mubr.bf16.mxu0 0
  %952 = vmatmul.mubr.bf16.gmra.mrb[0].mxu0 %v876
  %v953 = vpop.f32.mrb[0].mxu0
  %v954 = vadd.f32 0.0, %v953
  %v955 = vpop.f32.mrb[0].mxu0
  %v956 = vpop.f32.mrb[0].mxu0
  %v957 = vadd.f32 0.0, %v956
  %v958 = vpop.f32.mrb[0].mxu0
  %959 = vmatprep.mubr.bf16.mxu0 0
  %960 = vmatmul.mubr.bf16.gmra.mrb[0].mxu0 %v879
  %v961 = vpop.f32.mrb[0].mxu0
  %v962 = vadd.f32 0.0, %v961
  %v963 = vpop.f32.mrb[0].mxu0
  %v964 = vpop.f32.mrb[0].mxu0
  %v965 = vadd.f32 0.0, %v964
  %v966 = vpop.f32.mrb[0].mxu0
  %967 = vmatprep.mubr.bf16.mxu0 0
  %968 = vmatmul.mubr.bf16.gmra.mrb[0].mxu0 %v882
  %v969 = vpop.f32.mrb[0].mxu0
  %v970 = vadd.f32 0.0, %v969
  %v971 = vpop.f32.mrb[0].mxu0
  %v972 = vpop.f32.mrb[0].mxu0
  %v973 = vadd.f32 0.0, %v972
  %v974 = vpop.f32.mrb[0].mxu0
  %975 = vmatprep.mubr.bf16.mxu0 0
  %976 = vmatmul.mubr.bf16.gmra.mrb[0].mxu0 %v885
  %v977 = vpop.f32.mrb[0].mxu0
  %v978 = vadd.f32 0.0, %v977
  %v979 = vpop.f32.mrb[0].mxu0
  %v980 = vpop.f32.mrb[0].mxu0
  %v981 = vadd.f32 0.0, %v980
  %v982 = vpop.f32.mrb[0].mxu0
  %983 = vdwg.mxu0
  %s984 = scalar_lea.vmem [#allocation2], 384
  %985 = vst [vmem:[%s984] sm:$0xff] %v922
  %986 = vst [vmem:[%s984 + $0x8] sm:$0xff] %v925
  %987 = vst [vmem:[%s984 + $0x10] sm:$0xff] %v930
  %988 = vst [vmem:[%s984 + $0x18] sm:$0xff] %v933
  %989 = vst [vmem:[%s984 + $0x20] sm:$0xff] %v938
  %990 = vst [vmem:[%s984 + $0x28] sm:$0xff] %v941
  %991 = vst [vmem:[%s984 + $0x30] sm:$0xff] %v946
  %992 = vst [vmem:[%s984 + $0x38] sm:$0xff] %v949
  %993 = vst [vmem:[%s984 + $0x40] sm:$0xff] %v954
  %994 = vst [vmem:[%s984 + $0x48] sm:$0xff] %v957
  %995 = vst [vmem:[%s984 + $0x50] sm:$0xff] %v962
  %996 = vst [vmem:[%s984 + $0x58] sm:$0xff] %v965
  %997 = vst [vmem:[%s984 + $0x60] sm:$0xff] %v970
  %998 = vst [vmem:[%s984 + $0x68] sm:$0xff] %v973
  %999 = vst [vmem:[%s984 + $0x70] sm:$0xff] %v978
  %1000 = vst [vmem:[%s984 + $0x78] sm:$0xff] %v981
  %v1001 = vadd.f32 %v922, %v925
  %v1002 = vadd.f32 %v1001, %v930
  %v1003 = vadd.f32 %v1002, %v933
  %v1004 = vadd.f32 %v1003, %v938
  %v1005 = vadd.f32 %v1004, %v941
  %v1006 = vadd.f32 %v1005, %v946
  %v1007 = vadd.f32 %v1006, %v949
  %v1008 = vadd.f32 %v1007, %v954
  %v1009 = vadd.f32 %v1008, %v957
  %v1010 = vadd.f32 %v1009, %v962
  %v1011 = vadd.f32 %v1010, %v965
  %v1012 = vadd.f32 %v1011, %v970
  %v1013 = vadd.f32 %v1012, %v973
  %v1014 = vadd.f32 %v1013, %v978
  %v1015 = vadd.f32 %v1014, %v981
  %v1016 = vrot.slane %v1015, 4
  %v1017 = vadd.f32 %v1015, %v1016
  %v1018 = vrot.slane %v1017, 2
  %v1019 = vadd.f32 %v1017, %v1018
  %v1020 = vrot.slane %v1019, 1
  %v1021 = vadd.f32 %v1019, %v1020
  %v1022 = vadd.f32 %v767, %v1021
  %v1023 = vmul.f32 %v922, %v922
  %v1024 = vmul.f32 %v925, %v925
  %v1025 = vmul.f32 %v930, %v930
  %v1026 = vmul.f32 %v933, %v933
  %v1027 = vmul.f32 %v938, %v938
  %v1028 = vmul.f32 %v941, %v941
  %v1029 = vmul.f32 %v946, %v946
  %v1030 = vmul.f32 %v949, %v949
  %v1031 = vmul.f32 %v954, %v954
  %v1032 = vmul.f32 %v957, %v957
  %v1033 = vmul.f32 %v962, %v962
  %v1034 = vmul.f32 %v965, %v965
  %v1035 = vmul.f32 %v970, %v970
  %v1036 = vmul.f32 %v973, %v973
  %v1037 = vmul.f32 %v978, %v978
  %v1038 = vmul.f32 %v981, %v981
  %v1039 = vadd.f32 %v1023, %v1024
  %v1040 = vadd.f32 %v1039, %v1025
  %v1041 = vadd.f32 %v1040, %v1026
  %v1042 = vadd.f32 %v1041, %v1027
  %v1043 = vadd.f32 %v1042, %v1028
  %v1044 = vadd.f32 %v1043, %v1029
  %v1045 = vadd.f32 %v1044, %v1030
  %v1046 = vadd.f32 %v1045, %v1031
  %v1047 = vadd.f32 %v1046, %v1032
  %v1048 = vadd.f32 %v1047, %v1033
  %v1049 = vadd.f32 %v1048, %v1034
  %v1050 = vadd.f32 %v1049, %v1035
  %v1051 = vadd.f32 %v1050, %v1036
  %v1052 = vadd.f32 %v1051, %v1037
  %v1053 = vadd.f32 %v1052, %v1038
  %v1054 = vrot.slane %v1053, 4
  %v1055 = vadd.f32 %v1053, %v1054
  %v1056 = vrot.slane %v1055, 2
  %v1057 = vadd.f32 %v1055, %v1056
  %v1058 = vrot.slane %v1057, 1
  %v1059 = vadd.f32 %v1057, %v1058
  %v1060 = vadd.f32 %v805, %v1059
  %v1061 = vmul.f32 %v1022, 0.001953125
  %v1062 = vmul.f32 %v1060, 0.001953125
  %v1063 = vmul.f32 %v1061, %v1061
  %v1064 = vsub.f32 %v1062, %v1063
  %v1065 = vmax.f32 %v1064, 0.0
  %v1066 = vld [vmem:[%s2] sm:$0x1]
  %v1067 = vadd.f32 %v1065, 1e-05
  %v1068 = vrsqrt.pop %v1067
  %v1069 = vmul.f32 %v1066, %v1068
  %v1070 = vld [vmem:[%s3] sm:$0x1]
  %v1071 = vmul.f32 %v1061, %v1069
  %v1072 = vsub.f32 %v1070, %v1071
  %v1073 = vld [vmem:[#allocation2] sm:$0xff]
  %v1074 = vld [vmem:[#allocation2 + $0x8] sm:$0xff]
  %v1075 = vld [vmem:[#allocation2 + $0x10] sm:$0xff]
  %v1076 = vld [vmem:[#allocation2 + $0x18] sm:$0xff]
  %v1077 = vld [vmem:[#allocation2 + $0x20] sm:$0xff]
  %v1078 = vld [vmem:[#allocation2 + $0x28] sm:$0xff]
  %v1079 = vld [vmem:[#allocation2 + $0x30] sm:$0xff]
  %v1080 = vld [vmem:[#allocation2 + $0x38] sm:$0xff]
  %v1081 = vld [vmem:[#allocation2 + $0x40] sm:$0xff]
  %v1082 = vld [vmem:[#allocation2 + $0x48] sm:$0xff]
  %v1083 = vld [vmem:[#allocation2 + $0x50] sm:$0xff]
  %v1084 = vld [vmem:[#allocation2 + $0x58] sm:$0xff]
  %v1085 = vld [vmem:[#allocation2 + $0x60] sm:$0xff]
  %v1086 = vld [vmem:[#allocation2 + $0x68] sm:$0xff]
  %v1087 = vld [vmem:[#allocation2 + $0x70] sm:$0xff]
  %v1088 = vld [vmem:[#allocation2 + $0x78] sm:$0xff]
  %v1090 = vlaneseq
  %v1091 = vshrl.u32 %v1090, 7
  %v1092 = vsub.s32 0, %v1091
  %v1093 = vrot.slane %v1069, %v1092
  %v1095 = vmul.f32 %v1073, %v1093
  %v1096 = vmul.f32 %v1074, %v1093
  %v1097 = vmul.f32 %v1075, %v1093
  %v1098 = vmul.f32 %v1076, %v1093
  %v1099 = vmul.f32 %v1077, %v1093
  %v1100 = vmul.f32 %v1078, %v1093
  %v1101 = vmul.f32 %v1079, %v1093
  %v1102 = vmul.f32 %v1080, %v1093
  %v1103 = vmul.f32 %v1081, %v1093
  %v1104 = vmul.f32 %v1082, %v1093
  %v1105 = vmul.f32 %v1083, %v1093
  %v1106 = vmul.f32 %v1084, %v1093
  %v1107 = vmul.f32 %v1085, %v1093
  %v1108 = vmul.f32 %v1086, %v1093
  %v1109 = vmul.f32 %v1087, %v1093
  %v1110 = vmul.f32 %v1088, %v1093
  %v1112 = vlaneseq
  %v1113 = vshrl.u32 %v1112, 7
  %v1114 = vsub.s32 0, %v1113
  %v1115 = vrot.slane %v1072, %v1114
  %v1117 = vadd.f32 %v1095, %v1115
  %v1118 = vadd.f32 %v1096, %v1115
  %v1119 = vadd.f32 %v1097, %v1115
  %v1120 = vadd.f32 %v1098, %v1115
  %v1121 = vadd.f32 %v1099, %v1115
  %v1122 = vadd.f32 %v1100, %v1115
  %v1123 = vadd.f32 %v1101, %v1115
  %v1124 = vadd.f32 %v1102, %v1115
  %v1125 = vadd.f32 %v1103, %v1115
  %v1126 = vadd.f32 %v1104, %v1115
  %v1127 = vadd.f32 %v1105, %v1115
  %v1128 = vadd.f32 %v1106, %v1115
  %v1129 = vadd.f32 %v1107, %v1115
  %v1130 = vadd.f32 %v1108, %v1115
  %v1131 = vadd.f32 %v1109, %v1115
  %v1132 = vadd.f32 %v1110, %v1115
  %v1133 = vmax.f32 %v1117, 0.0
  %v1134 = vmax.f32 %v1118, 0.0
  %v1135 = vmax.f32 %v1119, 0.0
  %v1136 = vmax.f32 %v1120, 0.0
  %v1137 = vmax.f32 %v1121, 0.0
  %v1138 = vmax.f32 %v1122, 0.0
  %v1139 = vmax.f32 %v1123, 0.0
  %v1140 = vmax.f32 %v1124, 0.0
  %v1141 = vmax.f32 %v1125, 0.0
  %v1142 = vmax.f32 %v1126, 0.0
  %v1143 = vmax.f32 %v1127, 0.0
  %v1144 = vmax.f32 %v1128, 0.0
  %v1145 = vmax.f32 %v1129, 0.0
  %v1146 = vmax.f32 %v1130, 0.0
  %v1147 = vmax.f32 %v1131, 0.0
  %v1148 = vmax.f32 %v1132, 0.0
  %v1149 = vpack.c.bf16 %v1134, %v1133
  %v1150 = vpack.c.bf16 %v1136, %v1135
  %v1151 = vpack.c.bf16 %v1138, %v1137
  %v1152 = vpack.c.bf16 %v1140, %v1139
  %v1153 = vpack.c.bf16 %v1142, %v1141
  %v1154 = vpack.c.bf16 %v1144, %v1143
  %v1155 = vpack.c.bf16 %v1146, %v1145
  %v1156 = vpack.c.bf16 %v1148, %v1147
  %v1165 = vunpack.c.l.b16 %v1149
  %v1166 = vunpack.c.h.b16 %v1149
  %v1167 = vunpack.c.l.b16 %v1150
  %v1168 = vunpack.c.h.b16 %v1150
  %v1169 = vunpack.c.l.b16 %v1151
  %v1170 = vunpack.c.h.b16 %v1151
  %v1171 = vunpack.c.l.b16 %v1152
  %v1172 = vunpack.c.h.b16 %v1152
  %v1173 = vunpack.c.l.b16 %v1153
  %v1174 = vunpack.c.h.b16 %v1153
  %v1175 = vunpack.c.l.b16 %v1154
  %v1176 = vunpack.c.h.b16 %v1154
  %v1177 = vunpack.c.l.b16 %v1155
  %v1178 = vunpack.c.h.b16 %v1155
  %v1179 = vunpack.c.l.b16 %v1156
  %v1180 = vunpack.c.h.b16 %v1156
  %v1181 = vpack.c.b16 %v1165, %v1165
  %v1182 = vpack.c.b16 %v1166, %v1166
  %v1183 = vpack.c.b16 %v1167, %v1167
  %v1184 = vpack.c.b16 %v1168, %v1168
  %v1185 = vpack.c.b16 %v1169, %v1169
  %v1186 = vpack.c.b16 %v1170, %v1170
  %v1187 = vpack.c.b16 %v1171, %v1171
  %v1188 = vpack.c.b16 %v1172, %v1172
  %v1189 = vpack.c.b16 %v1173, %v1173
  %v1190 = vpack.c.b16 %v1174, %v1174
  %v1191 = vpack.c.b16 %v1175, %v1175
  %v1192 = vpack.c.b16 %v1176, %v1176
  %v1193 = vpack.c.b16 %v1177, %v1177
  %v1194 = vpack.c.b16 %v1178, %v1178
  %v1195 = vpack.c.b16 %v1179, %v1179
  %v1196 = vpack.c.b16 %v1180, %v1180
  %1213 = vst [vmem:[%s4] sm:$0xf] %v1181
  %1214 = vst [vmem:[%s4 + $0x4] sm:$0xf] %v1182
  %1215 = vst [vmem:[%s4 + $0x8] sm:$0xf] %v1183
  %1216 = vst [vmem:[%s4 + $0xc] sm:$0xf] %v1184
  %1217 = vst [vmem:[%s4 + $0x10] sm:$0xf] %v1185
  %1218 = vst [vmem:[%s4 + $0x14] sm:$0xf] %v1186
  %1219 = vst [vmem:[%s4 + $0x18] sm:$0xf] %v1187
  %1220 = vst [vmem:[%s4 + $0x1c] sm:$0xf] %v1188
  %1221 = vst [vmem:[%s4 + $0x20] sm:$0xf] %v1189
  %1222 = vst [vmem:[%s4 + $0x24] sm:$0xf] %v1190
  %1223 = vst [vmem:[%s4 + $0x28] sm:$0xf] %v1191
  %1224 = vst [vmem:[%s4 + $0x2c] sm:$0xf] %v1192
  %1225 = vst [vmem:[%s4 + $0x30] sm:$0xf] %v1193
  %1226 = vst [vmem:[%s4 + $0x34] sm:$0xf] %v1194
  %1227 = vst [vmem:[%s4 + $0x38] sm:$0xf] %v1195
  %1228 = vst [vmem:[%s4 + $0x3c] sm:$0xf] %v1196
  %v1229 = vld [vmem:[%s474] sm:$0xff]
  %v1230 = vld [vmem:[%s474 + $0x8] sm:$0xff]
  %v1231 = vld [vmem:[%s474 + $0x10] sm:$0xff]
  %v1232 = vld [vmem:[%s474 + $0x18] sm:$0xff]
  %v1233 = vld [vmem:[%s474 + $0x20] sm:$0xff]
  %v1234 = vld [vmem:[%s474 + $0x28] sm:$0xff]
  %v1235 = vld [vmem:[%s474 + $0x30] sm:$0xff]
  %v1236 = vld [vmem:[%s474 + $0x38] sm:$0xff]
  %v1237 = vld [vmem:[%s474 + $0x40] sm:$0xff]
  %v1238 = vld [vmem:[%s474 + $0x48] sm:$0xff]
  %v1239 = vld [vmem:[%s474 + $0x50] sm:$0xff]
  %v1240 = vld [vmem:[%s474 + $0x58] sm:$0xff]
  %v1241 = vld [vmem:[%s474 + $0x60] sm:$0xff]
  %v1242 = vld [vmem:[%s474 + $0x68] sm:$0xff]
  %v1243 = vld [vmem:[%s474 + $0x70] sm:$0xff]
  %v1244 = vld [vmem:[%s474 + $0x78] sm:$0xff]
  %v1245 = vmul.f32 %v1229, %v1093
  %v1246 = vmul.f32 %v1230, %v1093
  %v1247 = vmul.f32 %v1231, %v1093
  %v1248 = vmul.f32 %v1232, %v1093
  %v1249 = vmul.f32 %v1233, %v1093
  %v1250 = vmul.f32 %v1234, %v1093
  %v1251 = vmul.f32 %v1235, %v1093
  %v1252 = vmul.f32 %v1236, %v1093
  %v1253 = vmul.f32 %v1237, %v1093
  %v1254 = vmul.f32 %v1238, %v1093
  %v1255 = vmul.f32 %v1239, %v1093
  %v1256 = vmul.f32 %v1240, %v1093
  %v1257 = vmul.f32 %v1241, %v1093
  %v1258 = vmul.f32 %v1242, %v1093
  %v1259 = vmul.f32 %v1243, %v1093
  %v1260 = vmul.f32 %v1244, %v1093
  %v1261 = vadd.f32 %v1245, %v1115
  %v1262 = vadd.f32 %v1246, %v1115
  %v1263 = vadd.f32 %v1247, %v1115
  %v1264 = vadd.f32 %v1248, %v1115
  %v1265 = vadd.f32 %v1249, %v1115
  %v1266 = vadd.f32 %v1250, %v1115
  %v1267 = vadd.f32 %v1251, %v1115
  %v1268 = vadd.f32 %v1252, %v1115
  %v1269 = vadd.f32 %v1253, %v1115
  %v1270 = vadd.f32 %v1254, %v1115
  %v1271 = vadd.f32 %v1255, %v1115
  %v1272 = vadd.f32 %v1256, %v1115
  %v1273 = vadd.f32 %v1257, %v1115
  %v1274 = vadd.f32 %v1258, %v1115
  %v1275 = vadd.f32 %v1259, %v1115
  %v1276 = vadd.f32 %v1260, %v1115
  %v1277 = vmax.f32 %v1261, 0.0
  %v1278 = vmax.f32 %v1262, 0.0
  %v1279 = vmax.f32 %v1263, 0.0
  %v1280 = vmax.f32 %v1264, 0.0
  %v1281 = vmax.f32 %v1265, 0.0
  %v1282 = vmax.f32 %v1266, 0.0
  %v1283 = vmax.f32 %v1267, 0.0
  %v1284 = vmax.f32 %v1268, 0.0
  %v1285 = vmax.f32 %v1269, 0.0
  %v1286 = vmax.f32 %v1270, 0.0
  %v1287 = vmax.f32 %v1271, 0.0
  %v1288 = vmax.f32 %v1272, 0.0
  %v1289 = vmax.f32 %v1273, 0.0
  %v1290 = vmax.f32 %v1274, 0.0
  %v1291 = vmax.f32 %v1275, 0.0
  %v1292 = vmax.f32 %v1276, 0.0
  %v1293 = vpack.c.bf16 %v1278, %v1277
  %v1294 = vpack.c.bf16 %v1280, %v1279
  %v1295 = vpack.c.bf16 %v1282, %v1281
  %v1296 = vpack.c.bf16 %v1284, %v1283
  %v1297 = vpack.c.bf16 %v1286, %v1285
  %v1298 = vpack.c.bf16 %v1288, %v1287
  %v1299 = vpack.c.bf16 %v1290, %v1289
  %v1300 = vpack.c.bf16 %v1292, %v1291
  %v1309 = vunpack.c.l.b16 %v1293
  %v1310 = vunpack.c.h.b16 %v1293
  %v1311 = vunpack.c.l.b16 %v1294
  %v1312 = vunpack.c.h.b16 %v1294
  %v1313 = vunpack.c.l.b16 %v1295
  %v1314 = vunpack.c.h.b16 %v1295
  %v1315 = vunpack.c.l.b16 %v1296
  %v1316 = vunpack.c.h.b16 %v1296
  %v1317 = vunpack.c.l.b16 %v1297
  %v1318 = vunpack.c.h.b16 %v1297
  %v1319 = vunpack.c.l.b16 %v1298
  %v1320 = vunpack.c.h.b16 %v1298
  %v1321 = vunpack.c.l.b16 %v1299
  %v1322 = vunpack.c.h.b16 %v1299
  %v1323 = vunpack.c.l.b16 %v1300
  %v1324 = vunpack.c.h.b16 %v1300
  %v1325 = vpack.c.b16 %v1309, %v1309
  %v1326 = vpack.c.b16 %v1310, %v1310
  %v1327 = vpack.c.b16 %v1311, %v1311
  %v1328 = vpack.c.b16 %v1312, %v1312
  %v1329 = vpack.c.b16 %v1313, %v1313
  %v1330 = vpack.c.b16 %v1314, %v1314
  %v1331 = vpack.c.b16 %v1315, %v1315
  %v1332 = vpack.c.b16 %v1316, %v1316
  %v1333 = vpack.c.b16 %v1317, %v1317
  %v1334 = vpack.c.b16 %v1318, %v1318
  %v1335 = vpack.c.b16 %v1319, %v1319
  %v1336 = vpack.c.b16 %v1320, %v1320
  %v1337 = vpack.c.b16 %v1321, %v1321
  %v1338 = vpack.c.b16 %v1322, %v1322
  %v1339 = vpack.c.b16 %v1323, %v1323
  %v1340 = vpack.c.b16 %v1324, %v1324
  %s1357 = scalar_lea.vmem %s4, 64
  %1358 = vst [vmem:[%s1357] sm:$0xf] %v1325
  %1359 = vst [vmem:[%s1357 + $0x4] sm:$0xf] %v1326
  %1360 = vst [vmem:[%s1357 + $0x8] sm:$0xf] %v1327
  %1361 = vst [vmem:[%s1357 + $0xc] sm:$0xf] %v1328
  %1362 = vst [vmem:[%s1357 + $0x10] sm:$0xf] %v1329
  %1363 = vst [vmem:[%s1357 + $0x14] sm:$0xf] %v1330
  %1364 = vst [vmem:[%s1357 + $0x18] sm:$0xf] %v1331
  %1365 = vst [vmem:[%s1357 + $0x1c] sm:$0xf] %v1332
  %1366 = vst [vmem:[%s1357 + $0x20] sm:$0xf] %v1333
  %1367 = vst [vmem:[%s1357 + $0x24] sm:$0xf] %v1334
  %1368 = vst [vmem:[%s1357 + $0x28] sm:$0xf] %v1335
  %1369 = vst [vmem:[%s1357 + $0x2c] sm:$0xf] %v1336
  %1370 = vst [vmem:[%s1357 + $0x30] sm:$0xf] %v1337
  %1371 = vst [vmem:[%s1357 + $0x34] sm:$0xf] %v1338
  %1372 = vst [vmem:[%s1357 + $0x38] sm:$0xf] %v1339
  %1373 = vst [vmem:[%s1357 + $0x3c] sm:$0xf] %v1340
  %v1374 = vld [vmem:[%s729] sm:$0xff]
  %v1375 = vld [vmem:[%s729 + $0x8] sm:$0xff]
  %v1376 = vld [vmem:[%s729 + $0x10] sm:$0xff]
  %v1377 = vld [vmem:[%s729 + $0x18] sm:$0xff]
  %v1378 = vld [vmem:[%s729 + $0x20] sm:$0xff]
  %v1379 = vld [vmem:[%s729 + $0x28] sm:$0xff]
  %v1380 = vld [vmem:[%s729 + $0x30] sm:$0xff]
  %v1381 = vld [vmem:[%s729 + $0x38] sm:$0xff]
  %v1382 = vld [vmem:[%s729 + $0x40] sm:$0xff]
  %v1383 = vld [vmem:[%s729 + $0x48] sm:$0xff]
  %v1384 = vld [vmem:[%s729 + $0x50] sm:$0xff]
  %v1385 = vld [vmem:[%s729 + $0x58] sm:$0xff]
  %v1386 = vld [vmem:[%s729 + $0x60] sm:$0xff]
  %v1387 = vld [vmem:[%s729 + $0x68] sm:$0xff]
  %v1388 = vld [vmem:[%s729 + $0x70] sm:$0xff]
  %v1389 = vld [vmem:[%s729 + $0x78] sm:$0xff]
  %v1390 = vmul.f32 %v1374, %v1093
  %v1391 = vmul.f32 %v1375, %v1093
  %v1392 = vmul.f32 %v1376, %v1093
  %v1393 = vmul.f32 %v1377, %v1093
  %v1394 = vmul.f32 %v1378, %v1093
  %v1395 = vmul.f32 %v1379, %v1093
  %v1396 = vmul.f32 %v1380, %v1093
  %v1397 = vmul.f32 %v1381, %v1093
  %v1398 = vmul.f32 %v1382, %v1093
  %v1399 = vmul.f32 %v1383, %v1093
  %v1400 = vmul.f32 %v1384, %v1093
  %v1401 = vmul.f32 %v1385, %v1093
  %v1402 = vmul.f32 %v1386, %v1093
  %v1403 = vmul.f32 %v1387, %v1093
  %v1404 = vmul.f32 %v1388, %v1093
  %v1405 = vmul.f32 %v1389, %v1093
  %v1406 = vadd.f32 %v1390, %v1115
  %v1407 = vadd.f32 %v1391, %v1115
  %v1408 = vadd.f32 %v1392, %v1115
  %v1409 = vadd.f32 %v1393, %v1115
  %v1410 = vadd.f32 %v1394, %v1115
  %v1411 = vadd.f32 %v1395, %v1115
  %v1412 = vadd.f32 %v1396, %v1115
  %v1413 = vadd.f32 %v1397, %v1115
  %v1414 = vadd.f32 %v1398, %v1115
  %v1415 = vadd.f32 %v1399, %v1115
  %v1416 = vadd.f32 %v1400, %v1115
  %v1417 = vadd.f32 %v1401, %v1115
  %v1418 = vadd.f32 %v1402, %v1115
  %v1419 = vadd.f32 %v1403, %v1115
  %v1420 = vadd.f32 %v1404, %v1115
  %v1421 = vadd.f32 %v1405, %v1115
  %v1422 = vmax.f32 %v1406, 0.0
  %v1423 = vmax.f32 %v1407, 0.0
  %v1424 = vmax.f32 %v1408, 0.0
  %v1425 = vmax.f32 %v1409, 0.0
  %v1426 = vmax.f32 %v1410, 0.0
  %v1427 = vmax.f32 %v1411, 0.0
  %v1428 = vmax.f32 %v1412, 0.0
  %v1429 = vmax.f32 %v1413, 0.0
  %v1430 = vmax.f32 %v1414, 0.0
  %v1431 = vmax.f32 %v1415, 0.0
  %v1432 = vmax.f32 %v1416, 0.0
  %v1433 = vmax.f32 %v1417, 0.0
  %v1434 = vmax.f32 %v1418, 0.0
  %v1435 = vmax.f32 %v1419, 0.0
  %v1436 = vmax.f32 %v1420, 0.0
  %v1437 = vmax.f32 %v1421, 0.0
  %v1438 = vpack.c.bf16 %v1423, %v1422
  %v1439 = vpack.c.bf16 %v1425, %v1424
  %v1440 = vpack.c.bf16 %v1427, %v1426
  %v1441 = vpack.c.bf16 %v1429, %v1428
  %v1442 = vpack.c.bf16 %v1431, %v1430
  %v1443 = vpack.c.bf16 %v1433, %v1432
  %v1444 = vpack.c.bf16 %v1435, %v1434
  %v1445 = vpack.c.bf16 %v1437, %v1436
  %v1454 = vunpack.c.l.b16 %v1438
  %v1455 = vunpack.c.h.b16 %v1438
  %v1456 = vunpack.c.l.b16 %v1439
  %v1457 = vunpack.c.h.b16 %v1439
  %v1458 = vunpack.c.l.b16 %v1440
  %v1459 = vunpack.c.h.b16 %v1440
  %v1460 = vunpack.c.l.b16 %v1441
  %v1461 = vunpack.c.h.b16 %v1441
  %v1462 = vunpack.c.l.b16 %v1442
  %v1463 = vunpack.c.h.b16 %v1442
  %v1464 = vunpack.c.l.b16 %v1443
  %v1465 = vunpack.c.h.b16 %v1443
  %v1466 = vunpack.c.l.b16 %v1444
  %v1467 = vunpack.c.h.b16 %v1444
  %v1468 = vunpack.c.l.b16 %v1445
  %v1469 = vunpack.c.h.b16 %v1445
  %v1470 = vpack.c.b16 %v1454, %v1454
  %v1471 = vpack.c.b16 %v1455, %v1455
  %v1472 = vpack.c.b16 %v1456, %v1456
  %v1473 = vpack.c.b16 %v1457, %v1457
  %v1474 = vpack.c.b16 %v1458, %v1458
  %v1475 = vpack.c.b16 %v1459, %v1459
  %v1476 = vpack.c.b16 %v1460, %v1460
  %v1477 = vpack.c.b16 %v1461, %v1461
  %v1478 = vpack.c.b16 %v1462, %v1462
  %v1479 = vpack.c.b16 %v1463, %v1463
  %v1480 = vpack.c.b16 %v1464, %v1464
  %v1481 = vpack.c.b16 %v1465, %v1465
  %v1482 = vpack.c.b16 %v1466, %v1466
  %v1483 = vpack.c.b16 %v1467, %v1467
  %v1484 = vpack.c.b16 %v1468, %v1468
  %v1485 = vpack.c.b16 %v1469, %v1469
  %s1502 = scalar_lea.vmem %s4, 128
  %1503 = vst [vmem:[%s1502] sm:$0xf] %v1470
  %1504 = vst [vmem:[%s1502 + $0x4] sm:$0xf] %v1471
  %1505 = vst [vmem:[%s1502 + $0x8] sm:$0xf] %v1472
  %1506 = vst [vmem:[%s1502 + $0xc] sm:$0xf] %v1473
  %1507 = vst [vmem:[%s1502 + $0x10] sm:$0xf] %v1474
  %1508 = vst [vmem:[%s1502 + $0x14] sm:$0xf] %v1475
  %1509 = vst [vmem:[%s1502 + $0x18] sm:$0xf] %v1476
  %1510 = vst [vmem:[%s1502 + $0x1c] sm:$0xf] %v1477
  %1511 = vst [vmem:[%s1502 + $0x20] sm:$0xf] %v1478
  %1512 = vst [vmem:[%s1502 + $0x24] sm:$0xf] %v1479
  %1513 = vst [vmem:[%s1502 + $0x28] sm:$0xf] %v1480
  %1514 = vst [vmem:[%s1502 + $0x2c] sm:$0xf] %v1481
  %1515 = vst [vmem:[%s1502 + $0x30] sm:$0xf] %v1482
  %1516 = vst [vmem:[%s1502 + $0x34] sm:$0xf] %v1483
  %1517 = vst [vmem:[%s1502 + $0x38] sm:$0xf] %v1484
  %1518 = vst [vmem:[%s1502 + $0x3c] sm:$0xf] %v1485
  %v1519 = vld [vmem:[%s984] sm:$0xff]
  %v1520 = vld [vmem:[%s984 + $0x8] sm:$0xff]
  %v1521 = vld [vmem:[%s984 + $0x10] sm:$0xff]
  %v1522 = vld [vmem:[%s984 + $0x18] sm:$0xff]
  %v1523 = vld [vmem:[%s984 + $0x20] sm:$0xff]
  %v1524 = vld [vmem:[%s984 + $0x28] sm:$0xff]
  %v1525 = vld [vmem:[%s984 + $0x30] sm:$0xff]
  %v1526 = vld [vmem:[%s984 + $0x38] sm:$0xff]
  %v1527 = vld [vmem:[%s984 + $0x40] sm:$0xff]
  %v1528 = vld [vmem:[%s984 + $0x48] sm:$0xff]
  %v1529 = vld [vmem:[%s984 + $0x50] sm:$0xff]
  %v1530 = vld [vmem:[%s984 + $0x58] sm:$0xff]
  %v1531 = vld [vmem:[%s984 + $0x60] sm:$0xff]
  %v1532 = vld [vmem:[%s984 + $0x68] sm:$0xff]
  %v1533 = vld [vmem:[%s984 + $0x70] sm:$0xff]
  %v1534 = vld [vmem:[%s984 + $0x78] sm:$0xff]
  %v1535 = vmul.f32 %v1519, %v1093
  %v1536 = vmul.f32 %v1520, %v1093
  %v1537 = vmul.f32 %v1521, %v1093
  %v1538 = vmul.f32 %v1522, %v1093
  %v1539 = vmul.f32 %v1523, %v1093
  %v1540 = vmul.f32 %v1524, %v1093
  %v1541 = vmul.f32 %v1525, %v1093
  %v1542 = vmul.f32 %v1526, %v1093
  %v1543 = vmul.f32 %v1527, %v1093
  %v1544 = vmul.f32 %v1528, %v1093
  %v1545 = vmul.f32 %v1529, %v1093
  %v1546 = vmul.f32 %v1530, %v1093
  %v1547 = vmul.f32 %v1531, %v1093
  %v1548 = vmul.f32 %v1532, %v1093
  %v1549 = vmul.f32 %v1533, %v1093
  %v1550 = vmul.f32 %v1534, %v1093
  %v1551 = vadd.f32 %v1535, %v1115
  %v1552 = vadd.f32 %v1536, %v1115
  %v1553 = vadd.f32 %v1537, %v1115
  %v1554 = vadd.f32 %v1538, %v1115
  %v1555 = vadd.f32 %v1539, %v1115
  %v1556 = vadd.f32 %v1540, %v1115
  %v1557 = vadd.f32 %v1541, %v1115
  %v1558 = vadd.f32 %v1542, %v1115
  %v1559 = vadd.f32 %v1543, %v1115
  %v1560 = vadd.f32 %v1544, %v1115
  %v1561 = vadd.f32 %v1545, %v1115
  %v1562 = vadd.f32 %v1546, %v1115
  %v1563 = vadd.f32 %v1547, %v1115
  %v1564 = vadd.f32 %v1548, %v1115
  %v1565 = vadd.f32 %v1549, %v1115
  %v1566 = vadd.f32 %v1550, %v1115
  %v1567 = vmax.f32 %v1551, 0.0
  %v1568 = vmax.f32 %v1552, 0.0
  %v1569 = vmax.f32 %v1553, 0.0
  %v1570 = vmax.f32 %v1554, 0.0
  %v1571 = vmax.f32 %v1555, 0.0
  %v1572 = vmax.f32 %v1556, 0.0
  %v1573 = vmax.f32 %v1557, 0.0
  %v1574 = vmax.f32 %v1558, 0.0
  %v1575 = vmax.f32 %v1559, 0.0
  %v1576 = vmax.f32 %v1560, 0.0
  %v1577 = vmax.f32 %v1561, 0.0
  %v1578 = vmax.f32 %v1562, 0.0
  %v1579 = vmax.f32 %v1563, 0.0
  %v1580 = vmax.f32 %v1564, 0.0
  %v1581 = vmax.f32 %v1565, 0.0
  %v1582 = vmax.f32 %v1566, 0.0
  %v1583 = vpack.c.bf16 %v1568, %v1567
  %v1584 = vpack.c.bf16 %v1570, %v1569
  %v1585 = vpack.c.bf16 %v1572, %v1571
  %v1586 = vpack.c.bf16 %v1574, %v1573
  %v1587 = vpack.c.bf16 %v1576, %v1575
  %v1588 = vpack.c.bf16 %v1578, %v1577
  %v1589 = vpack.c.bf16 %v1580, %v1579
  %v1590 = vpack.c.bf16 %v1582, %v1581
  %v1599 = vunpack.c.l.b16 %v1583
  %v1600 = vunpack.c.h.b16 %v1583
  %v1601 = vunpack.c.l.b16 %v1584
  %v1602 = vunpack.c.h.b16 %v1584
  %v1603 = vunpack.c.l.b16 %v1585
  %v1604 = vunpack.c.h.b16 %v1585
  %v1605 = vunpack.c.l.b16 %v1586
  %v1606 = vunpack.c.h.b16 %v1586
  %v1607 = vunpack.c.l.b16 %v1587
  %v1608 = vunpack.c.h.b16 %v1587
  %v1609 = vunpack.c.l.b16 %v1588
  %v1610 = vunpack.c.h.b16 %v1588
  %v1611 = vunpack.c.l.b16 %v1589
  %v1612 = vunpack.c.h.b16 %v1589
  %v1613 = vunpack.c.l.b16 %v1590
  %v1614 = vunpack.c.h.b16 %v1590
  %v1615 = vpack.c.b16 %v1599, %v1599
  %v1616 = vpack.c.b16 %v1600, %v1600
  %v1617 = vpack.c.b16 %v1601, %v1601
  %v1618 = vpack.c.b16 %v1602, %v1602
  %v1619 = vpack.c.b16 %v1603, %v1603
  %v1620 = vpack.c.b16 %v1604, %v1604
  %v1621 = vpack.c.b16 %v1605, %v1605
  %v1622 = vpack.c.b16 %v1606, %v1606
  %v1623 = vpack.c.b16 %v1607, %v1607
  %v1624 = vpack.c.b16 %v1608, %v1608
  %v1625 = vpack.c.b16 %v1609, %v1609
  %v1626 = vpack.c.b16 %v1610, %v1610
  %v1627 = vpack.c.b16 %v1611, %v1611
  %v1628 = vpack.c.b16 %v1612, %v1612
  %v1629 = vpack.c.b16 %v1613, %v1613
  %v1630 = vpack.c.b16 %v1614, %v1614
  %s1647 = scalar_lea.vmem %s4, 192
  %1648 = vst [vmem:[%s1647] sm:$0xf] %v1615
  %1649 = vst [vmem:[%s1647 + $0x4] sm:$0xf] %v1616
  %1650 = vst [vmem:[%s1647 + $0x8] sm:$0xf] %v1617
  %1651 = vst [vmem:[%s1647 + $0xc] sm:$0xf] %v1618
  %1652 = vst [vmem:[%s1647 + $0x10] sm:$0xf] %v1619
  %1653 = vst [vmem:[%s1647 + $0x14] sm:$0xf] %v1620
  %1654 = vst [vmem:[%s1647 + $0x18] sm:$0xf] %v1621
  %1655 = vst [vmem:[%s1647 + $0x1c] sm:$0xf] %v1622
  %1656 = vst [vmem:[%s1647 + $0x20] sm:$0xf] %v1623
  %1657 = vst [vmem:[%s1647 + $0x24] sm:$0xf] %v1624
  %1658 = vst [vmem:[%s1647 + $0x28] sm:$0xf] %v1625
  %1659 = vst [vmem:[%s1647 + $0x2c] sm:$0xf] %v1626
  %1660 = vst [vmem:[%s1647 + $0x30] sm:$0xf] %v1627
  %1661 = vst [vmem:[%s1647 + $0x34] sm:$0xf] %v1628
  %1662 = vst [vmem:[%s1647 + $0x38] sm:$0xf] %v1629
  %1663 = vst [vmem:[%s1647 + $0x3c] sm:$0xf] %v1630
  // Predicated region
  $region18: #{cnn_block_forward.1} parent=0 // pred_check
    _
  $region19: #{cnn_block_forward.1} parent=0 // pred_check_branch
    %1665 = sbr.rel (0) target = $region21
  $region20: #{cnn_block_forward.1} parent=0 // pred_region
    _
  $region21: #{cnn_block_forward.1} parent=0 // pred_fallthru
    _
  // Predicated region
  $region22: #{cnn_block_forward.1} parent=0 // pred_check
    _
  $region23: #{cnn_block_forward.1} parent=0 // pred_check_branch
    %1667 = sbr.rel (0) target = $region25
  $region24: #{cnn_block_forward.1} parent=0 // pred_region
    _
  $region25: #{cnn_block_forward.1} parent=0 // pred_fallthru
    _

</llo_original>
